<compile_context>
chip_gen: v7x
topology: tpu7x:2x2x1
jax: 0.10.0
libtpu: 0.0.40
codegen_flags: <defaults>
</compile_context>

<pallas_src>
import functools

import jax
import jax.numpy as jnp
from jax.experimental import pallas as pl
from jax.experimental.pallas import tpu as pltpu


# ----------------------------------------------------------------------------
# Fused kernel.  Activation layout (w-major, sublane-aligned blocks):
#   rows  = w * NP + n      (w in [0,4), n = padded view-batch index, NP = 8)
#   h1w   : (R, 32)   cols = k*8 + c1      (three stride-2 pre-conv1 taps)
#   h2    : (R, 16)   cols = h             (pre-network output)
#   e1/e2 : (R, 128)  cols = h*8 + c       (lane-dense encoder activations)
#   proj/pred : (NP, 16)   rows = view*B + b  (rows >= 3B are padding)
# ----------------------------------------------------------------------------
def _byol_fused_kernel(x_ref, w_ref, b_ref, out_ref, loss_ref, *,
                       B, NP, mse_inv, offs):
    f32 = jnp.float32
    bf16 = jnp.bfloat16
    dot = functools.partial(jnp.dot, preferred_element_type=f32)
    R = 4 * NP

    def wmat(name, rows, cols, extra=0):
        o = offs[name] + extra
        return w_ref[o:o + rows, 0:cols]                     # bf16 slice

    bias = b_ref[...]                                        # (8, 128) f32

    # ---- pre conv1: one matmul produces all three stride-2 taps -----------
    h1w = dot(x_ref[...].astype(bf16), wmat("w1", x_ref.shape[1], 32))
    h1w = jnp.maximum(h1w + bias[0:1, 0:32], 0.0)            # (R, 32)
    # conv2's k=0 tap at w=0 reads conv1 output t=-1 -> zero it (conv2 padding)
    ri = jax.lax.broadcasted_iota(jnp.int32, (R, 32), 0)
    ci = jax.lax.broadcasted_iota(jnp.int32, (R, 32), 1)
    h1w = jnp.where((ri < NP) & (ci < 8), 0.0, h1w)

    # ---- pre conv2: single matmul, taps folded along K --------------------
    h2 = dot(h1w.astype(bf16), wmat("w2", 32, 16)) + bias[1:2, 0:16]
    h2 = jnp.maximum(h2, 0.0)                                # (R, 16)

    # ---- w-shift by one block (replaces gather-by-matmul) -----------------
    def wshift(a, d):
        z = jnp.zeros((NP, a.shape[1]), f32)
        if d < 0:                                            # reads column w-1
            return jnp.concatenate([z, a[0:3 * NP]], axis=0)
        return jnp.concatenate([a[NP:4 * NP], z], axis=0)    # reads column w+1

    # ---- encoder conv1 (1->8): 3 kw taps accumulated -----------------------
    # (kept as 3 K=16 matmuls; a K=48 fusion would need a non-128-aligned
    #  lane concatenation)
    acc = dot(wshift(h2, -1).astype(bf16), wmat("q1", 16, 128, extra=0))
    acc = acc + dot(h2.astype(bf16), wmat("q1", 16, 128, extra=16))
    acc = acc + dot(wshift(h2, +1).astype(bf16), wmat("q1", 16, 128, extra=32))
    e1 = jnp.maximum(acc + bias[2:3, :], 0.0)                # (R, 128)

    # ---- encoder conv2 (8->8): 3 kw taps fused along K (K = 384) ----------
    x2 = jnp.concatenate([wshift(e1, -1), e1, wshift(e1, +1)], axis=1)  # (R,384)
    e2 = dot(x2.astype(bf16), wmat("q2", 384, 128)) + bias[3:4, :]
    e2 = jnp.maximum(e2, 0.0)                                # (R, 128)

    # ---- AdaptiveAvgPool3d((1,16,4)) == channel mean ------------------------
    pooled = dot(e2.astype(bf16), wmat("mp", 128, 16))       # (R, 16)

    out_ref[0, :, :] = h2                                    # pre-network output
    out_ref[1, :, :] = pooled                                # pooled representation

    # ---- flatten (4 aligned row blocks -> lanes) + projector MLP (K=512) ---
    pin = jnp.concatenate([e2[0:NP], e2[NP:2 * NP],
                           e2[2 * NP:3 * NP], e2[3 * NP:4 * NP]], axis=1)
    ph = jnp.maximum(dot(pin.astype(bf16), wmat("p1", 512, 32))
                     + bias[4:5, 0:32], 0.0)
    proj = dot(ph.astype(bf16), wmat("p2", 32, 16)) + bias[5:6, 0:16]   # (NP,16)

    # ---- predictor MLP ------------------------------------------------------
    qh = jnp.maximum(dot(proj.astype(bf16), wmat("r1", 16, 32))
                     + bias[6:7, 0:32], 0.0)
    pred = dot(qh.astype(bf16), wmat("r2", 32, 16)) + bias[7:8, 0:16]   # (NP,16)

    # ---- fused BYOL loss: static row slices, VPU only ----------------------
    # target/modest branches share the (deep-copied) online weights, and the
    # reference reuses rep02 for all *03 online tensors -> pred03 == pred02,
    # so the 4th MSE term duplicates the 2nd (factor 2 below).
    d1 = pred[0:B] - proj[B:2 * B]          # MSE(pred01, target_proj02)
    d2 = pred[B:2 * B] - proj[0:B]          # MSE(pred02, target_proj01)  (x2)
    d3 = pred[0:B] - proj[2 * B:3 * B]      # MSE(pred01, modest_proj03)
    sq = jnp.sum(d1 * d1) + 2.0 * jnp.sum(d2 * d2) + jnp.sum(d3 * d3)
    loss_ref[0, 0] = sq * mse_inv


# ----------------------------------------------------------------------------
# Wrapper: folds conv weights into matmul form, packs everything into 3 DMAs.
# ----------------------------------------------------------------------------
def efficient_byol_forward(params, x01, x02, x03):
    f32 = jnp.float32
    B, Cin, T = x01.shape                      # (2, 4, 16)
    N = 3 * B                                  # batched views [x01; x02; x03]
    NP = ((N + 7) // 8) * 8                    # sublane-aligned padded batch
    R = 4 * NP
    H, W = 16, 4                               # encoder spatial dims
    PROJ = params["proj_w2"].shape[1]          # projection size (16)

    # ---- batch the three views, zero-pad to NP rows ------------------------
    xs = jnp.concatenate([x01, x02, x03], axis=0).astype(f32)        # (N,4,16)
    xs = jnp.pad(xs, ((0, NP - N), (0, 0), (0, 0)))                  # (NP,4,16)

    # patches[w*NP+n, ci*8+pos] = x[n, ci, 4w-3+pos]  (zeros outside [0,16))
    xpad = jnp.pad(xs, ((0, 0), (0, 0), (3, 4)))                     # (NP,4,23)
    blocks = jnp.stack([xpad[:, :, 4 * w:4 * w + 8] for w in range(W)], axis=0)
    patches = blocks.reshape(R, Cin * 8)                             # (R, 32)

    # ---- fold conv weights into matmul form ---------------------------------
    w1 = params["pre_w1"].astype(f32)                                # (8,4,3)
    posi = jnp.arange(8)[:, None, None]
    ki = jnp.arange(4)[None, :, None]
    ji = jnp.arange(3)[None, None, :]
    selm = ((posi == 2 * ki + ji) & (ki < 3)).astype(f32)            # (8,4,3)
    W1big = jnp.einsum("pkj,oij->ipko", selm, w1).reshape(Cin * 8, 32)

    w2 = params["pre_w2"].astype(f32)                                # (16,8,3)
    W2mat = jnp.zeros((32, 16), f32).at[:24].set(
        jnp.transpose(w2, (2, 1, 0)).reshape(24, 16))                # rows k*8+ci

    g = jnp.arange(H)[:, None]
    hh = jnp.arange(H)[None, :]
    ch = jnp.stack([(g == hh + kh - 1).astype(f32) for kh in range(3)])  # (3,16,16)
    w1e = params["enc_w1"].astype(f32)                               # (8,1,3,3)
    w2e = params["enc_w2"].astype(f32)                               # (8,8,3,3)
    Q1 = jnp.einsum("kgh,ckw->wghc", ch, w1e[:, 0]).reshape(3 * H, H * 8)    # (48,128)
    Q2 = jnp.einsum("kgh,oikw->wgiho", ch, w2e).reshape(3 * H * 8, H * 8)    # (384,128)
    mpool = jnp.kron(jnp.eye(H, dtype=f32), jnp.ones((8, 1), f32) / 8.0)     # (128,16)

    # ---- ONE bf16 weight slab (16-row-aligned sections, 128 lanes) ----------
    sections = [("w1", W1big), ("w2", W2mat), ("q1", Q1), ("q2", Q2),
                ("mp", mpool),
                ("p1", params["proj_w1"].astype(f32)),
                ("p2", params["proj_w2"].astype(f32)),
                ("r1", params["pred_w1"].astype(f32)),
                ("r2", params["pred_w2"].astype(f32))]
    offs, parts, row0 = {}, [], 0
    for name, m in sections:
        offs[name] = row0
        row0 += m.shape[0]
        parts.append(jnp.pad(m, ((0, 0), (0, 128 - m.shape[1]))))
    wslab = jnp.concatenate(parts, axis=0).astype(jnp.bfloat16)      # (1216,128)

    # ---- ONE (8,128) f32 bias slab ------------------------------------------
    def brow(v):
        v = v.astype(f32)
        return jnp.pad(v, (0, 128 - v.shape[0]))
    bslab = jnp.stack([
        brow(jnp.tile(params["pre_b1"].astype(f32), 4)),
        brow(params["pre_b2"]),
        brow(jnp.tile(params["enc_b1"].astype(f32), H)),
        brow(jnp.tile(params["enc_b2"].astype(f32), H)),
        brow(params["proj_b1"]), brow(params["proj_b2"]),
        brow(params["pred_b1"]), brow(params["pred_b2"])], axis=0)   # (8,128)

    kernel = functools.partial(_byol_fused_kernel, B=B, NP=NP,
                               mse_inv=1.0 / float(B * PROJ), offs=offs)

    flops = 2 * (R * 32 * 32 + R * 32 * 16 + 3 * R * 16 * 128 + R * 384 * 128
                 + R * 128 * 16 + NP * 512 * 32 + NP * 32 * 16
                 + NP * 16 * 32 + NP * 32 * 16)
    bytes_accessed = (patches.size * 4 + wslab.size * 2 + bslab.size * 4
                      + 2 * R * 16 * 4 + 4)
    vmem_spec = pl.BlockSpec(memory_space=pltpu.MemorySpace.VMEM)

    outmat, loss = pl.pallas_call(
        kernel,
        out_shape=(jax.ShapeDtypeStruct((2, R, 16), f32),   # [pre ; pooled]
                   jax.ShapeDtypeStruct((1, 1), f32)),      # scalar loss
        in_specs=[vmem_spec, vmem_spec, vmem_spec],
        out_specs=(vmem_spec,
                   pl.BlockSpec(memory_space=pltpu.MemorySpace.SMEM)),
        compiler_params=pltpu.CompilerParams(vmem_limit_bytes=4 * 1024 * 1024),
        cost_estimate=pl.CostEstimate(flops=int(flops), transcendentals=0,
                                      bytes_accessed=int(bytes_accessed)),
    )(patches, wslab, bslab)

    # rows=(w, n), cols=h  ->  (n,16,4) pre output / (n,1,16,4) pooled output
    pre_all = outmat[0].reshape(W, NP, H)[:, :N].transpose(1, 2, 0)
    pool_all = outmat[1].reshape(W, NP, H)[:, :N].transpose(1, 2, 0)[:, None]
    online_x01_pre, online_x02_pre = pre_all[0:B], pre_all[B:2 * B]
    rep01_out, rep02_out = pool_all[0:B], pool_all[B:2 * B]
    loss_scalar = loss[0, 0]

    # target network is a deep copy of the online network -> identical outputs.
    return (online_x01_pre, online_x02_pre, rep01_out, rep02_out,
            online_x01_pre, online_x02_pre, rep01_out, rep02_out,
            loss_scalar)


# ----------------------------------------------------------------------------
# Deterministic parameter initialization (synthetic stand-in for the missing
# PreNetwork / EncoderNetwork / Projection / Prediction module definitions).
# ----------------------------------------------------------------------------
def _init_dense(key, fan_in, fan_out):
    kw, kb = jax.random.split(key)
    w = jax.random.normal(kw, (fan_in, fan_out), jnp.float32) / jnp.sqrt(float(fan_in))
    b = 0.01 * jax.random.normal(kb, (fan_out,), jnp.float32)
    return w, b


def _init_conv(key, cout, cin, *k):
    kw, kb = jax.random.split(key)
    fan_in = cin
    for kk in k:
        fan_in *= kk
    w = jax.random.normal(kw, (cout, cin) + tuple(k), jnp.float32) / jnp.sqrt(float(fan_in))
    b = 0.01 * jax.random.normal(kb, (cout,), jnp.float32)
    return w, b


def init_params(key):
    keys = jax.random.split(key, 8)
    p = {}
    # PreNetwork: Conv1d(4->8,k3,s2,p1), Conv1d(8->16,k3,s2,p1)
    p["pre_w1"], p["pre_b1"] = _init_conv(keys[0], 8, 4, 3)
    p["pre_w2"], p["pre_b2"] = _init_conv(keys[1], 16, 8, 3)
    # EncoderNetwork: Conv2d(1->8,3x3,p1), Conv2d(8->8,3x3,p1)
    p["enc_w1"], p["enc_b1"] = _init_conv(keys[2], 8, 1, 3, 3)
    p["enc_w2"], p["enc_b2"] = _init_conv(keys[3], 8, 8, 3, 3)
    # ProjectionNetwork: Linear(512->32) -> ReLU -> Linear(32->16)
    p["proj_w1"], p["proj_b1"] = _init_dense(keys[4], 512, 32)
    p["proj_w2"], p["proj_b2"] = _init_dense(keys[5], 32, 16)
    # PredictionNetwork: Linear(16->32) -> ReLU -> Linear(32->16)
    p["pred_w1"], p["pred_b1"] = _init_dense(keys[6], 16, 32)
    p["pred_w2"], p["pred_b2"] = _init_dense(keys[7], 32, 16)
    return p


# ----------------------------------------------------------------------------
if __name__ == "__main__":
    key = jax.random.PRNGKey(0)
    kx1, kx2, kx3, kp = jax.random.split(key, 4)

    # Three augmented views: (batch=2, channels=4, time=16)
    x01 = jax.random.normal(kx1, (2, 4, 16), jnp.float32)
    x02 = jax.random.normal(kx2, (2, 4, 16), jnp.float32)
    x03 = jax.random.normal(kx3, (2, 4, 16), jnp.float32)

    params = init_params(kp)

    outputs = jax.jit(efficient_byol_forward)(params, x01, x02, x03)
    outputs = jax.block_until_ready(outputs)

    assert outputs[0].shape == (2, 16, 4)          # online_x01_pre
    assert outputs[2].shape == (2, 1, 16, 4)       # online_representation01_output
    assert outputs[6].shape == (2, 1, 16, 4)       # target_representation01_output
    assert outputs[8].shape == ()                  # scalar loss
    assert bool(jnp.isfinite(outputs[8]))
    print("KERNEL_OK")
</pallas_src>

<mosaic_0001>
module attributes {stable_mosaic.version = 11 : i64} {
  func.func @_byol_fused_kernel(%arg0: memref<32x32xf32, #tpu.memory_space<vmem>>, %arg1: memref<1216x128xbf16, #tpu.memory_space<vmem>>, %arg2: memref<8x128xf32, #tpu.memory_space<vmem>>, %arg3: memref<2x32x16xf32, #tpu.memory_space<vmem>>, %arg4: memref<1x1xf32, #tpu.memory_space<smem>>) attributes {dimension_semantics = [], scalar_prefetch = 0 : i64, scratch_operands = 0 : i64, tpu.core_type = #tpu.core_type<tc>} {
    %c0 = arith.constant 0 : index
    %c0_0 = arith.constant 0 : index
    %0 = vector.load %arg2[%c0, %c0_0] : memref<8x128xf32, #tpu.memory_space<vmem>>, vector<8x128xf32>
    %c0_1 = arith.constant 0 : index
    %c0_2 = arith.constant 0 : index
    %1 = vector.load %arg0[%c0_1, %c0_2] : memref<32x32xf32, #tpu.memory_space<vmem>>, vector<32x32xf32>
    %2 = arith.truncf %1 : vector<32x32xf32> to vector<32x32xbf16>
    %c0_3 = arith.constant 0 : index
    %c0_4 = arith.constant 0 : index
    %3 = vector.load %arg1[%c0_3, %c0_4] : memref<1216x128xbf16, #tpu.memory_space<vmem>>, vector<32x32xbf16>
    %cst = arith.constant dense<0.000000e+00> : vector<32x32xf32>
    %4 = tpu.matmul %2, %3, %cst {dimension_numbers = #tpu.dot_dimension_numbers<[1], [0], [0], [1], [0, 0, 1, 1], [], []>} : vector<32x32xbf16>, vector<32x32xbf16>, vector<32x32xf32> -> vector<32x32xf32>
    %5 = vector.extract_strided_slice %0 {offsets = [0, 0], sizes = [1, 32], strides = [1, 1]} : vector<8x128xf32> to vector<1x32xf32>
    %6 = vector.broadcast %5 : vector<1x32xf32> to vector<32x32xf32>
    %7 = arith.addf %4, %6 : vector<32x32xf32>
    %cst_5 = arith.constant 0.000000e+00 : f32
    %8 = vector.broadcast %cst_5 : f32 to vector<32x32xf32>
    %9 = arith.maximumf %7, %8 : vector<32x32xf32>
    %10 = tpu.iota {dimensions = array<i32: 0>} : vector<32x32xi32>
    %11 = tpu.iota {dimensions = array<i32: 1>} : vector<32x32xi32>
    %c8_i32 = arith.constant 8 : i32
    %12 = vector.broadcast %c8_i32 : i32 to vector<32x32xi32>
    %13 = arith.cmpi slt, %10, %12 : vector<32x32xi32>
    %c8_i32_6 = arith.constant 8 : i32
    %14 = vector.broadcast %c8_i32_6 : i32 to vector<32x32xi32>
    %15 = arith.cmpi slt, %11, %14 : vector<32x32xi32>
    %16 = arith.andi %13, %15 : vector<32x32xi1>
    %cst_7 = arith.constant 0.000000e+00 : f32
    %17 = vector.broadcast %cst_7 : f32 to vector<32x32xf32>
    %18 = arith.select %16, %17, %9 : vector<32x32xi1>, vector<32x32xf32>
    %19 = arith.truncf %18 : vector<32x32xf32> to vector<32x32xbf16>
    %c32 = arith.constant 32 : index
    %c0_8 = arith.constant 0 : index
    %20 = vector.load %arg1[%c32, %c0_8] : memref<1216x128xbf16, #tpu.memory_space<vmem>>, vector<32x16xbf16>
    %cst_9 = arith.constant dense<0.000000e+00> : vector<32x16xf32>
    %21 = tpu.matmul %19, %20, %cst_9 {dimension_numbers = #tpu.dot_dimension_numbers<[1], [0], [0], [1], [0, 0, 1, 1], [], []>} : vector<32x32xbf16>, vector<32x16xbf16>, vector<32x16xf32> -> vector<32x16xf32>
    %22 = vector.extract_strided_slice %0 {offsets = [1, 0], sizes = [1, 16], strides = [1, 1]} : vector<8x128xf32> to vector<1x16xf32>
    %23 = vector.broadcast %22 : vector<1x16xf32> to vector<32x16xf32>
    %24 = arith.addf %21, %23 : vector<32x16xf32>
    %cst_10 = arith.constant 0.000000e+00 : f32
    %25 = vector.broadcast %cst_10 : f32 to vector<32x16xf32>
    %26 = arith.maximumf %24, %25 : vector<32x16xf32>
    %cst_11 = arith.constant 0.000000e+00 : f32
    %27 = vector.broadcast %cst_11 : f32 to vector<8x16xf32>
    %28 = vector.extract_strided_slice %26 {offsets = [0, 0], sizes = [24, 16], strides = [1, 1]} : vector<32x16xf32> to vector<24x16xf32>
    %29 = tpu.concatenate %27, %28 in 0 : vector<8x16xf32>, vector<24x16xf32> -> vector<32x16xf32>
    %30 = arith.truncf %29 : vector<32x16xf32> to vector<32x16xbf16>
    %c64 = arith.constant 64 : index
    %c0_12 = arith.constant 0 : index
    %31 = vector.load %arg1[%c64, %c0_12] : memref<1216x128xbf16, #tpu.memory_space<vmem>>, vector<16x128xbf16>
    %cst_13 = arith.constant dense<0.000000e+00> : vector<32x128xf32>
    %32 = tpu.matmul %30, %31, %cst_13 {dimension_numbers = #tpu.dot_dimension_numbers<[1], [0], [0], [1], [0, 0, 1, 1], [], []>} : vector<32x16xbf16>, vector<16x128xbf16>, vector<32x128xf32> -> vector<32x128xf32>
    %33 = arith.truncf %26 : vector<32x16xf32> to vector<32x16xbf16>
    %c80 = arith.constant 80 : index
    %c0_14 = arith.constant 0 : index
    %34 = vector.load %arg1[%c80, %c0_14] : memref<1216x128xbf16, #tpu.memory_space<vmem>>, vector<16x128xbf16>
    %cst_15 = arith.constant dense<0.000000e+00> : vector<32x128xf32>
    %35 = tpu.matmul %33, %34, %cst_15 {dimension_numbers = #tpu.dot_dimension_numbers<[1], [0], [0], [1], [0, 0, 1, 1], [], []>} : vector<32x16xbf16>, vector<16x128xbf16>, vector<32x128xf32> -> vector<32x128xf32>
    %36 = arith.addf %32, %35 : vector<32x128xf32>
    %cst_16 = arith.constant 0.000000e+00 : f32
    %37 = vector.broadcast %cst_16 : f32 to vector<8x16xf32>
    %38 = vector.extract_strided_slice %26 {offsets = [8, 0], sizes = [24, 16], strides = [1, 1]} : vector<32x16xf32> to vector<24x16xf32>
    %39 = tpu.concatenate %38, %37 in 0 : vector<24x16xf32>, vector<8x16xf32> -> vector<32x16xf32>
    %40 = arith.truncf %39 : vector<32x16xf32> to vector<32x16xbf16>
    %c96 = arith.constant 96 : index
    %c0_17 = arith.constant 0 : index
    %41 = vector.load %arg1[%c96, %c0_17] : memref<1216x128xbf16, #tpu.memory_space<vmem>>, vector<16x128xbf16>
    %cst_18 = arith.constant dense<0.000000e+00> : vector<32x128xf32>
    %42 = tpu.matmul %40, %41, %cst_18 {dimension_numbers = #tpu.dot_dimension_numbers<[1], [0], [0], [1], [0, 0, 1, 1], [], []>} : vector<32x16xbf16>, vector<16x128xbf16>, vector<32x128xf32> -> vector<32x128xf32>
    %43 = arith.addf %36, %42 : vector<32x128xf32>
    %44 = vector.extract_strided_slice %0 {offsets = [2, 0], sizes = [1, 128], strides = [1, 1]} : vector<8x128xf32> to vector<1x128xf32>
    %45 = vector.broadcast %44 : vector<1x128xf32> to vector<32x128xf32>
    %46 = arith.addf %43, %45 : vector<32x128xf32>
    %cst_19 = arith.constant 0.000000e+00 : f32
    %47 = vector.broadcast %cst_19 : f32 to vector<32x128xf32>
    %48 = arith.maximumf %46, %47 : vector<32x128xf32>
    %cst_20 = arith.constant 0.000000e+00 : f32
    %49 = vector.broadcast %cst_20 : f32 to vector<8x128xf32>
    %50 = vector.extract_strided_slice %48 {offsets = [0, 0], sizes = [24, 128], strides = [1, 1]} : vector<32x128xf32> to vector<24x128xf32>
    %51 = tpu.concatenate %49, %50 in 0 : vector<8x128xf32>, vector<24x128xf32> -> vector<32x128xf32>
    %cst_21 = arith.constant 0.000000e+00 : f32
    %52 = vector.broadcast %cst_21 : f32 to vector<8x128xf32>
    %53 = vector.extract_strided_slice %48 {offsets = [8, 0], sizes = [24, 128], strides = [1, 1]} : vector<32x128xf32> to vector<24x128xf32>
    %54 = tpu.concatenate %53, %52 in 0 : vector<24x128xf32>, vector<8x128xf32> -> vector<32x128xf32>
    %55 = tpu.concatenate %51, %48, %54 in 1 : vector<32x128xf32>, vector<32x128xf32>, vector<32x128xf32> -> vector<32x384xf32>
    %56 = arith.truncf %55 : vector<32x384xf32> to vector<32x384xbf16>
    %c112 = arith.constant 112 : index
    %c0_22 = arith.constant 0 : index
    %57 = vector.load %arg1[%c112, %c0_22] : memref<1216x128xbf16, #tpu.memory_space<vmem>>, vector<384x128xbf16>
    %cst_23 = arith.constant dense<0.000000e+00> : vector<32x128xf32>
    %58 = tpu.matmul %56, %57, %cst_23 {dimension_numbers = #tpu.dot_dimension_numbers<[1], [0], [0], [1], [0, 0, 1, 1], [], []>} : vector<32x384xbf16>, vector<384x128xbf16>, vector<32x128xf32> -> vector<32x128xf32>
    %59 = vector.extract_strided_slice %0 {offsets = [3, 0], sizes = [1, 128], strides = [1, 1]} : vector<8x128xf32> to vector<1x128xf32>
    %60 = vector.broadcast %59 : vector<1x128xf32> to vector<32x128xf32>
    %61 = arith.addf %58, %60 : vector<32x128xf32>
    %cst_24 = arith.constant 0.000000e+00 : f32
    %62 = vector.broadcast %cst_24 : f32 to vector<32x128xf32>
    %63 = arith.maximumf %61, %62 : vector<32x128xf32>
    %64 = arith.truncf %63 : vector<32x128xf32> to vector<32x128xbf16>
    %c496 = arith.constant 496 : index
    %c0_25 = arith.constant 0 : index
    %65 = vector.load %arg1[%c496, %c0_25] : memref<1216x128xbf16, #tpu.memory_space<vmem>>, vector<128x16xbf16>
    %cst_26 = arith.constant dense<0.000000e+00> : vector<32x16xf32>
    %66 = tpu.matmul %64, %65, %cst_26 {dimension_numbers = #tpu.dot_dimension_numbers<[1], [0], [0], [1], [0, 0, 1, 1], [], []>} : vector<32x128xbf16>, vector<128x16xbf16>, vector<32x16xf32> -> vector<32x16xf32>
    %c0_27 = arith.constant 0 : index
    %c0_28 = arith.constant 0 : index
    %c0_29 = arith.constant 0 : index
    %67 = vector.load %arg3[%c0_27, %c0_28, %c0_29] : memref<2x32x16xf32, #tpu.memory_space<vmem>>, vector<1x32x16xf32>
    %68 = vector.shape_cast %67 : vector<1x32x16xf32> to vector<32x16xf32>
    %69 = vector.shape_cast %26 : vector<32x16xf32> to vector<1x32x16xf32>
    tpu.vector_store %arg3[%c0_27, %c0_28, %c0_29], %69 {strides = array<i32>} : memref<2x32x16xf32, #tpu.memory_space<vmem>>, vector<1x32x16xf32>,
    %c1 = arith.constant 1 : index
    %c0_30 = arith.constant 0 : index
    %c0_31 = arith.constant 0 : index
    %70 = vector.load %arg3[%c1, %c0_30, %c0_31] : memref<2x32x16xf32, #tpu.memory_space<vmem>>, vector<1x32x16xf32>
    %71 = vector.shape_cast %70 : vector<1x32x16xf32> to vector<32x16xf32>
    %72 = vector.shape_cast %66 : vector<32x16xf32> to vector<1x32x16xf32>
    tpu.vector_store %arg3[%c1, %c0_30, %c0_31], %72 {strides = array<i32>} : memref<2x32x16xf32, #tpu.memory_space<vmem>>, vector<1x32x16xf32>,
    %73 = vector.extract_strided_slice %63 {offsets = [0, 0], sizes = [8, 128], strides = [1, 1]} : vector<32x128xf32> to vector<8x128xf32>
    %74 = vector.extract_strided_slice %63 {offsets = [8, 0], sizes = [8, 128], strides = [1, 1]} : vector<32x128xf32> to vector<8x128xf32>
    %75 = vector.extract_strided_slice %63 {offsets = [16, 0], sizes = [8, 128], strides = [1, 1]} : vector<32x128xf32> to vector<8x128xf32>
    %76 = vector.extract_strided_slice %63 {offsets = [24, 0], sizes = [8, 128], strides = [1, 1]} : vector<32x128xf32> to vector<8x128xf32>
    %77 = tpu.concatenate %73, %74, %75, %76 in 1 : vector<8x128xf32>, vector<8x128xf32>, vector<8x128xf32>, vector<8x128xf32> -> vector<8x512xf32>
    %78 = arith.truncf %77 : vector<8x512xf32> to vector<8x512xbf16>
    %c624 = arith.constant 624 : index
    %c0_32 = arith.constant 0 : index
    %79 = vector.load %arg1[%c624, %c0_32] : memref<1216x128xbf16, #tpu.memory_space<vmem>>, vector<512x32xbf16>
    %cst_33 = arith.constant dense<0.000000e+00> : vector<8x32xf32>
    %80 = tpu.matmul %78, %79, %cst_33 {dimension_numbers = #tpu.dot_dimension_numbers<[1], [0], [0], [1], [0, 0, 1, 1], [], []>} : vector<8x512xbf16>, vector<512x32xbf16>, vector<8x32xf32> -> vector<8x32xf32>
    %81 = vector.extract_strided_slice %0 {offsets = [4, 0], sizes = [1, 32], strides = [1, 1]} : vector<8x128xf32> to vector<1x32xf32>
    %82 = vector.broadcast %81 : vector<1x32xf32> to vector<8x32xf32>
    %83 = arith.addf %80, %82 : vector<8x32xf32>
    %cst_34 = arith.constant 0.000000e+00 : f32
    %84 = vector.broadcast %cst_34 : f32 to vector<8x32xf32>
    %85 = arith.maximumf %83, %84 : vector<8x32xf32>
    %86 = arith.truncf %85 : vector<8x32xf32> to vector<8x32xbf16>
    %c1136 = arith.constant 1136 : index
    %c0_35 = arith.constant 0 : index
    %87 = vector.load %arg1[%c1136, %c0_35] : memref<1216x128xbf16, #tpu.memory_space<vmem>>, vector<32x16xbf16>
    %cst_36 = arith.constant dense<0.000000e+00> : vector<8x16xf32>
    %88 = tpu.matmul %86, %87, %cst_36 {dimension_numbers = #tpu.dot_dimension_numbers<[1], [0], [0], [1], [0, 0, 1, 1], [], []>} : vector<8x32xbf16>, vector<32x16xbf16>, vector<8x16xf32> -> vector<8x16xf32>
    %89 = vector.extract_strided_slice %0 {offsets = [5, 0], sizes = [1, 16], strides = [1, 1]} : vector<8x128xf32> to vector<1x16xf32>
    %90 = vector.broadcast %89 : vector<1x16xf32> to vector<8x16xf32>
    %91 = arith.addf %88, %90 : vector<8x16xf32>
    %92 = arith.truncf %91 : vector<8x16xf32> to vector<8x16xbf16>
    %c1168 = arith.constant 1168 : index
    %c0_37 = arith.constant 0 : index
    %93 = vector.load %arg1[%c1168, %c0_37] : memref<1216x128xbf16, #tpu.memory_space<vmem>>, vector<16x32xbf16>
    %cst_38 = arith.constant dense<0.000000e+00> : vector<8x32xf32>
    %94 = tpu.matmul %92, %93, %cst_38 {dimension_numbers = #tpu.dot_dimension_numbers<[1], [0], [0], [1], [0, 0, 1, 1], [], []>} : vector<8x16xbf16>, vector<16x32xbf16>, vector<8x32xf32> -> vector<8x32xf32>
    %95 = vector.extract_strided_slice %0 {offsets = [6, 0], sizes = [1, 32], strides = [1, 1]} : vector<8x128xf32> to vector<1x32xf32>
    %96 = vector.broadcast %95 : vector<1x32xf32> to vector<8x32xf32>
    %97 = arith.addf %94, %96 : vector<8x32xf32>
    %cst_39 = arith.constant 0.000000e+00 : f32
    %98 = vector.broadcast %cst_39 : f32 to vector<8x32xf32>
    %99 = arith.maximumf %97, %98 : vector<8x32xf32>
    %100 = arith.truncf %99 : vector<8x32xf32> to vector<8x32xbf16>
    %c1184 = arith.constant 1184 : index
    %c0_40 = arith.constant 0 : index
    %101 = vector.load %arg1[%c1184, %c0_40] : memref<1216x128xbf16, #tpu.memory_space<vmem>>, vector<32x16xbf16>
    %cst_41 = arith.constant dense<0.000000e+00> : vector<8x16xf32>
    %102 = tpu.matmul %100, %101, %cst_41 {dimension_numbers = #tpu.dot_dimension_numbers<[1], [0], [0], [1], [0, 0, 1, 1], [], []>} : vector<8x32xbf16>, vector<32x16xbf16>, vector<8x16xf32> -> vector<8x16xf32>
    %103 = vector.extract_strided_slice %0 {offsets = [7, 0], sizes = [1, 16], strides = [1, 1]} : vector<8x128xf32> to vector<1x16xf32>
    %104 = vector.broadcast %103 : vector<1x16xf32> to vector<8x16xf32>
    %105 = arith.addf %102, %104 : vector<8x16xf32>
    %106 = vector.extract_strided_slice %105 {offsets = [0, 0], sizes = [2, 16], strides = [1, 1]} : vector<8x16xf32> to vector<2x16xf32>
    %107 = vector.extract_strided_slice %91 {offsets = [2, 0], sizes = [2, 16], strides = [1, 1]} : vector<8x16xf32> to vector<2x16xf32>
    %108 = arith.subf %106, %107 : vector<2x16xf32>
    %109 = vector.extract_strided_slice %105 {offsets = [2, 0], sizes = [2, 16], strides = [1, 1]} : vector<8x16xf32> to vector<2x16xf32>
    %110 = vector.extract_strided_slice %91 {offsets = [0, 0], sizes = [2, 16], strides = [1, 1]} : vector<8x16xf32> to vector<2x16xf32>
    %111 = arith.subf %109, %110 : vector<2x16xf32>
    %112 = vector.extract_strided_slice %105 {offsets = [0, 0], sizes = [2, 16], strides = [1, 1]} : vector<8x16xf32> to vector<2x16xf32>
    %113 = vector.extract_strided_slice %91 {offsets = [4, 0], sizes = [2, 16], strides = [1, 1]} : vector<8x16xf32> to vector<2x16xf32>
    %114 = arith.subf %112, %113 : vector<2x16xf32>
    %115 = arith.mulf %108, %108 : vector<2x16xf32>
    %116 = vector.shape_cast %115 : vector<2x16xf32> to vector<1x2x16xf32>
    %cst_42 = arith.constant dense<0.000000e+00> : vector<1xf32>
    %117 = vector.multi_reduction <add>, %116, %cst_42 [1, 2] : vector<1x2x16xf32> to vector<1xf32>
    %118 = vector.shape_cast %117 : vector<1xf32> to vector<1x1x1xf32>
    %119 = vector.extract %118[0, 0, 0] : f32 from vector<1x1x1xf32>
    %120 = arith.mulf %111, %111 : vector<2x16xf32>
    %121 = vector.shape_cast %120 : vector<2x16xf32> to vector<1x2x16xf32>
    %cst_43 = arith.constant dense<0.000000e+00> : vector<1xf32>
    %122 = vector.multi_reduction <add>, %121, %cst_43 [1, 2] : vector<1x2x16xf32> to vector<1xf32>
    %123 = vector.shape_cast %122 : vector<1xf32> to vector<1x1x1xf32>
    %124 = vector.extract %123[0, 0, 0] : f32 from vector<1x1x1xf32>
    %cst_44 = arith.constant 2.000000e+00 : f32
    %125 = arith.mulf %cst_44, %124 : f32
    %126 = arith.addf %119, %125 : f32
    %127 = arith.mulf %114, %114 : vector<2x16xf32>
    %128 = vector.shape_cast %127 : vector<2x16xf32> to vector<1x2x16xf32>
    %cst_45 = arith.constant dense<0.000000e+00> : vector<1xf32>
    %129 = vector.multi_reduction <add>, %128, %cst_45 [1, 2] : vector<1x2x16xf32> to vector<1xf32>
    %130 = vector.shape_cast %129 : vector<1xf32> to vector<1x1x1xf32>
    %131 = vector.extract %130[0, 0, 0] : f32 from vector<1x1x1xf32>
    %132 = arith.addf %126, %131 : f32
    %cst_46 = arith.constant 3.125000e-02 : f32
    %133 = arith.mulf %132, %cst_46 : f32
    %c0_47 = arith.constant 0 : index
    %c0_48 = arith.constant 0 : index
    %134 = memref.load %arg4[%c0_47, %c0_48] : memref<1x1xf32, #tpu.memory_space<smem>>
    memref.store %133, %arg4[%c0_47, %c0_48] : memref<1x1xf32, #tpu.memory_space<smem>>
    return
  }
}

</mosaic_0001>

<llo_original>
// kernel: tile.18
$region0: #{tile.18}
  #allocation0 [shape = 's32[1]{0}', space=sflag, size = 0x4, scoped, tag = 'scoped memory for tile.18']
  %s0 = inlined_call_operand.vmem [shape: f32[8], index: 0, kind: input, shape index: {}]
  %s1 = inlined_call_operand.vmem [shape: f32[4,8], index: 1, kind: output, shape index: {}]
  // Predicated region
  $region2: #{tile.18} parent=0 // pred_check
    _
  $region3: #{tile.18} parent=0 // pred_check_branch
    %3 = sbr.rel (0) target = $region5
  $region4: #{tile.18} parent=0 // pred_region
    _
  $region5: #{tile.18} parent=0 // pred_fallthru
    _
  %v4 = vld [vmem:[%s0] ss:$0 sm:$0xff]
  %5 = vst [vmem:[%s1] sm:$0xf] %v4

// kernel: tile.19
$region0: #{tile.19}
  %s0 = inlined_call_operand.vmem [shape: f32[4,8], index: 0, kind: input, shape index: {}]
  %s1 = inlined_call_operand.vmem [shape: f32[32], index: 1, kind: output, shape index: {}]
  $region1: #{tile.19} parent=0
    #allocation0 [shape = 'u8[4096]{0}', space=vmem, size = 0x1000, scoped, tag = 'scoped mem for output reshape']
    #allocation1 [shape = 'u8[4096]{0}', space=vmem, size = 0x1000, scoped, tag = 'scoped mem for input reshape']
    %s3 = sshllo.u32 0, 4
    %v4 = vld [vmem:[%s0] sm:%s3]
    %5 = vst [vmem:[#allocation1] sm:%s3] %v4
    %v6 = vld [vmem:[#allocation1] sm:$0x1]
    %vm7 = vcmask 64512
    %8 = vst.msk [vmem:[#allocation0] sm:$0x1] %vm7, %v6
    %s9 = scalar_lea.vmem [#allocation1], 3
    %v10 = vld [vmem:[%s9] sm:$0x1]
    %11 = vrot.lane.b32.xlu0 %v10, 24
    %v12 = vpop.permute.xlu0 %11
    %vm13 = vcmask 261312
    %14 = vst.msk [vmem:[#allocation0] sm:$0x1] %vm13, %v12
    %s15 = scalar_lea.vmem [#allocation1], 2
    %v16 = vld [vmem:[%s15] sm:$0x1]
    %17 = vrot.lane.b32.xlu0 %v16, 16
    %v18 = vpop.permute.xlu0 %17
    %vm19 = vcmask 195712
    %20 = vst.msk [vmem:[#allocation0] sm:$0x1] %vm19, %v18
    %s21 = scalar_lea.vmem [#allocation1], 1
    %v22 = vld [vmem:[%s21] sm:$0x1]
    %23 = vrot.lane.b32.xlu0 %v22, 8
    %v24 = vpop.permute.xlu0 %23
    %vm25 = vcmask 130112
    %26 = vst.msk [vmem:[#allocation0] sm:$0x1] %vm25, %v24
    %s28 = sshllo.u32 0, 1
    %v30 = vld [vmem:[#allocation0] sm:%s28]
    %s31 = sshllo.u32 0, 1
    %32 = vst [vmem:[%s1] sm:%s31] %v30

// kernel: tile.23
$region0: #{tile.23}
  #allocation0 [shape = 's32[1]{0}', space=sflag, size = 0x4, scoped, tag = 'scoped memory for tile.23']
  %s0 = inlined_call_operand.vmem [shape: f32[8], index: 0, kind: input, shape index: {}]
  %s1 = inlined_call_operand.vmem [shape: f32[16,8], index: 1, kind: output, shape index: {}]
  // Predicated region
  $region2: #{tile.23} parent=0 // pred_check
    _
  $region3: #{tile.23} parent=0 // pred_check_branch
    %3 = sbr.rel (0) target = $region5
  $region4: #{tile.23} parent=0 // pred_region
    _
  $region5: #{tile.23} parent=0 // pred_fallthru
    _
  %v4 = vld [vmem:[%s0] ss:$0 sm:$0xff]
  %5 = vst [vmem:[%s1] sm:$0xff] %v4
  %s6 = scalar_lea.vmem %s1, 8
  %7 = vst [vmem:[%s6] sm:$0xff] %v4

// kernel: efficient_byol_forward.1
$region0: #{efficient_byol_forward.1}
  #allocation0 [shape = 'u32[]', space=smem, size = 0x4, offset = 0x4, fixed_abs, tag = 'smem constant byte address 0x4 - core index']
  #allocation1 [shape = 'u32[144,128]{1,0:T(1,128)}', space=vmem, size = 0x12000, scoped, tag = 'internal scratch']
  %s0 = inlined_call_operand.vmem [shape: f32[32,32], index: 0, kind: input, shape index: {}]
  %s1 = inlined_call_operand.vmem [shape: bf16[1216,128], index: 1, kind: input, shape index: {}]
  %s2 = inlined_call_operand.vmem [shape: f32[8,128], index: 2, kind: input, shape index: {}]
  %s3 = inlined_call_operand.vmem [shape: f32[2,32,16], index: 3, kind: output, shape index: {0}]
  %s4 = inlined_call_operand.hbm [shape: f32[1,1], index: 4, kind: output, shape index: {1}]
  %5 = xla_tuple %s3, %s4
  %s6 = sld [smem:[#allocation0]]
  $region30: #{efficient_byol_forward.1} parent=0
    _
  %s8 = ssub.s32 1, %s6
  %s9 = scalar_select 0, %s8, %s6
  $region1: #{efficient_byol_forward.1} parent=0
    #allocation2 [shape = 'u8[512]{0}', space=smem, size = 0x200, scoped, tag = 'output window, operand 1, single buffered']
    #allocation3 [shape = 's32[1]{0}', space=sflag, size = 0x4, scoped, tag = 'scoped memory for efficient_byol_forward.1']
    %10 = vsyncpa [#allocation3], 0
    // Predicated region
    $region2: #{efficient_byol_forward.1} parent=1 // pred_check
      _
    $region3: #{efficient_byol_forward.1} parent=1 // pred_check_branch
      %12 = sbr.rel (0) target = $region5
    $region4: #{efficient_byol_forward.1} parent=1 // pred_region
      _
    $region5: #{efficient_byol_forward.1} parent=1 // pred_fallthru
      _
    // Predicated region
    $region6: #{efficient_byol_forward.1} parent=1 // pred_check
      _
    $region7: #{efficient_byol_forward.1} parent=1 // pred_check_branch
      %14 = sbr.rel (0) target = $region9
    $region8: #{efficient_byol_forward.1} parent=1 // pred_region
      _
    $region9: #{efficient_byol_forward.1} parent=1 // pred_fallthru
      _
    // Predicated region
    $region10: #{efficient_byol_forward.1} parent=1 // pred_check
      _
    $region11: #{efficient_byol_forward.1} parent=1 // pred_check_branch
      %16 = sbr.rel (0) target = $region13
    $region12: #{efficient_byol_forward.1} parent=1 // pred_region
      _
    $region13: #{efficient_byol_forward.1} parent=1 // pred_fallthru
      _
    %v18 = vld [vmem:[%s2] sm:$0xff]
    %v19 = vld [vmem:[%s0] sm:$0xff]
    %v20 = vld [vmem:[%s0 + $0x8] sm:$0xff]
    %v21 = vld [vmem:[%s0 + $0x10] sm:$0xff]
    %v22 = vld [vmem:[%s0 + $0x18] sm:$0xff]
    %v23 = vpack.c.bf16 %v20, %v19
    %v24 = vpack.c.bf16 %v22, %v21
    %v25 = vld [vmem:[%s1] sm:$0xf]
    %v26 = vld [vmem:[%s1 + $0x4] sm:$0xf]
    %v27 = vld [vmem:[%s1 + $0x8] sm:$0xf]
    %v28 = vld [vmem:[%s1 + $0xc] sm:$0xf]
    %v29 = vlaneseq
    %v30 = vshrl.u32 %v29, 7
    %v31 = vsub.s32 0, %v30
    %v32 = vrot.slane %v18, %v31
    %v37 = vunpack.c.l.b16 %v25
    %v38 = vunpack.c.l.b16 %v26
    %v39 = vunpack.c.l.b16 %v27
    %v40 = vunpack.c.l.b16 %v28
    %v41 = vpack.c.b16 %v38, %v37
    %v42 = vpack.c.b16 %v40, %v39
    %vm45 = vcmask 261120
    %v47 = vsel %vm45, %v23, 0
    %v50 = vsel %vm45, %v24, 0
    %52 = vmatprep.subr.bf16.mxu0 0
    %53 = vmatpush1.bf16.msra.mxu0 %v41
    %54 = vmatprep.subr.bf16.mxu0 0
    %55 = vmatpush1.bf16.msra.mxu0 %v42
    %56 = vmatprep.subr.bf16.mxu0 0
    %57 = vmatpush1.bf16.msra.mxu0 0
    %58 = vmatprep.subr.bf16.mxu0 0
    %59 = vmatpush1.bf16.msra.mxu0 0
    %60 = vmatprep.subr.bf16.mxu0 0
    %61 = vmatpush1.bf16.msra.mxu0 0
    %62 = vmatprep.subr.bf16.mxu0 0
    %63 = vmatpush1.bf16.msra.mxu0 0
    %64 = vmatprep.subr.bf16.mxu0 0
    %65 = vmatpush1.bf16.msra.mxu0 0
    %66 = vmatprep.subr.bf16.mxu0 0
    %67 = vmatpush1.bf16.msra.mxu0 0
    %68 = vmatprep.subr.bf16.mxu0 0
    %69 = vmatpush1.bf16.msra.mxu0 0
    %70 = vmatprep.subr.bf16.mxu0 0
    %71 = vmatpush1.bf16.msra.mxu0 0
    %72 = vmatprep.subr.bf16.mxu0 0
    %73 = vmatpush1.bf16.msra.mxu0 0
    %74 = vmatprep.subr.bf16.mxu0 0
    %75 = vmatpush1.bf16.msra.mxu0 0
    %76 = vmatprep.subr.bf16.mxu0 0
    %77 = vmatpush1.bf16.msra.mxu0 0
    %78 = vmatprep.subr.bf16.mxu0 0
    %79 = vmatpush1.bf16.msra.mxu0 0
    %80 = vmatprep.subr.bf16.mxu0 0
    %81 = vmatpush1.bf16.msra.mxu0 0
    %82 = vmatprep.subr.bf16.mxu0 0
    %83 = vmatpush1.bf16.msra.mxu0 0
    %84 = vmatprep.mubr.bf16.mxu0 0
    %85 = vmatmul.mubr.bf16.gmra.mrb[0].mxu0 %v47
    %v86 = vpop.f32.mrb[0].mxu0
    %v87 = vadd.f32 %v32, %v86
    %v88 = vpop.f32.mrb[0].mxu0
    %v89 = vpop.f32.mrb[0].mxu0
    %v90 = vadd.f32 %v32, %v89
    %v91 = vpop.f32.mrb[0].mxu0
    %92 = vmatprep.mubr.bf16.mxu0 0
    %93 = vmatmul.mubr.bf16.gmra.mrb[0].mxu0 %v50
    %v94 = vpop.f32.mrb[0].mxu0
    %v95 = vadd.f32 %v32, %v94
    %v96 = vpop.f32.mrb[0].mxu0
    %v97 = vpop.f32.mrb[0].mxu0
    %v98 = vadd.f32 %v32, %v97
    %v99 = vpop.f32.mrb[0].mxu0
    %100 = vdwg.mxu0
    %v101 = vmax.f32 %v87, 0.0
    %v102 = vmax.f32 %v90, 0.0
    %v103 = vmax.f32 %v95, 0.0
    %v104 = vmax.f32 %v98, 0.0
    %v105 = vlaneseq
    %v106 = vshrl.u32 %v105, 7
    %v107 = vadd.s32 %v106, 8
    %v108 = vadd.s32 %v106, 16
    %v109 = vadd.s32 %v106, 24
    %v110 = vlaneseq
    %v111 = vand.u32 %v110, 127
    %vm112 = vcmp.lt.s32.totalorder %v106, 8
    %vm113 = vcmp.lt.s32.totalorder %v107, 8
    %vm114 = vcmp.lt.s32.totalorder %v108, 8
    %vm115 = vcmp.lt.s32.totalorder %v109, 8
    %vm116 = vcmp.lt.s32.totalorder %v111, 8
    %vm117 = vmand %vm112, %vm116
    %vm118 = vmand %vm113, %vm116
    %vm119 = vmand %vm114, %vm116
    %vm120 = vmand %vm115, %vm116
    %v121 = vsel %vm117, 0.0, %v101
    %v122 = vsel %vm118, 0.0, %v102
    %v123 = vsel %vm119, 0.0, %v103
    %v124 = vsel %vm120, 0.0, %v104
    %v125 = vpack.c.bf16 %v122, %v121
    %v126 = vpack.c.bf16 %v124, %v123
    %v127 = vld [vmem:[%s1 + $0x10] sm:$0xf]
    %v128 = vld [vmem:[%s1 + $0x14] sm:$0xf]
    %v129 = vld [vmem:[%s1 + $0x18] sm:$0xf]
    %v130 = vld [vmem:[%s1 + $0x1c] sm:$0xf]
    %v131 = vlaneseq
    %v132 = vshrl.u32 %v131, 7
    %v133 = vsub.s32 1, %v132
    %v134 = vrot.slane %v18, %v133
    %v139 = vunpack.c.l.b16 %v127
    %v140 = vunpack.c.l.b16 %v128
    %v141 = vunpack.c.l.b16 %v129
    %v142 = vunpack.c.l.b16 %v130
    %v143 = vpack.c.b16 %v140, %v139
    %v144 = vpack.c.b16 %v142, %v141
    %v148 = vsel %vm45, %v125, 0
    %v151 = vsel %vm45, %v126, 0
    %153 = vmatprep.subr.bf16.mxu0 0
    %154 = vmatpush1.bf16.msra.mxu0 %v143
    %155 = vmatprep.subr.bf16.mxu0 0
    %156 = vmatpush1.bf16.msra.mxu0 %v144
    %157 = vmatprep.subr.bf16.mxu0 0
    %158 = vmatpush1.bf16.msra.mxu0 0
    %159 = vmatprep.subr.bf16.mxu0 0
    %160 = vmatpush1.bf16.msra.mxu0 0
    %161 = vmatprep.subr.bf16.mxu0 0
    %162 = vmatpush1.bf16.msra.mxu0 0
    %163 = vmatprep.subr.bf16.mxu0 0
    %164 = vmatpush1.bf16.msra.mxu0 0
    %165 = vmatprep.subr.bf16.mxu0 0
    %166 = vmatpush1.bf16.msra.mxu0 0
    %167 = vmatprep.subr.bf16.mxu0 0
    %168 = vmatpush1.bf16.msra.mxu0 0
    %169 = vmatprep.subr.bf16.mxu0 0
    %170 = vmatpush1.bf16.msra.mxu0 0
    %171 = vmatprep.subr.bf16.mxu0 0
    %172 = vmatpush1.bf16.msra.mxu0 0
    %173 = vmatprep.subr.bf16.mxu0 0
    %174 = vmatpush1.bf16.msra.mxu0 0
    %175 = vmatprep.subr.bf16.mxu0 0
    %176 = vmatpush1.bf16.msra.mxu0 0
    %177 = vmatprep.subr.bf16.mxu0 0
    %178 = vmatpush1.bf16.msra.mxu0 0
    %179 = vmatprep.subr.bf16.mxu0 0
    %180 = vmatpush1.bf16.msra.mxu0 0
    %181 = vmatprep.subr.bf16.mxu0 0
    %182 = vmatpush1.bf16.msra.mxu0 0
    %183 = vmatprep.subr.bf16.mxu0 0
    %184 = vmatpush1.bf16.msra.mxu0 0
    %185 = vmatprep.mubr.bf16.mxu0 0
    %186 = vmatmul.mubr.bf16.gmra.mrb[0].mxu0 %v148
    %v187 = vpop.f32.mrb[0].mxu0
    %v188 = vadd.f32 %v134, %v187
    %v189 = vpop.f32.mrb[0].mxu0
    %v190 = vpop.f32.mrb[0].mxu0
    %v191 = vadd.f32 %v134, %v190
    %v192 = vpop.f32.mrb[0].mxu0
    %193 = vmatprep.mubr.bf16.mxu0 0
    %194 = vmatmul.mubr.bf16.gmra.mrb[0].mxu0 %v151
    %v195 = vpop.f32.mrb[0].mxu0
    %v196 = vadd.f32 %v134, %v195
    %v197 = vpop.f32.mrb[0].mxu0
    %v198 = vpop.f32.mrb[0].mxu0
    %v199 = vadd.f32 %v134, %v198
    %v200 = vpop.f32.mrb[0].mxu0
    %201 = vdwg.mxu0
    %v202 = vmax.f32 %v188, 0.0
    %v203 = vmax.f32 %v191, 0.0
    %v204 = vmax.f32 %v196, 0.0
    %v205 = vmax.f32 %v199, 0.0
    %v206 = vpack.c.bf16 %v202, 0.0
    %v207 = vpack.c.bf16 %v204, %v203
    %v208 = vld [vmem:[%s1 + $0x20] sm:$0xf]
    %v209 = vld [vmem:[%s1 + $0x24] sm:$0xf]
    %v210 = vpack.c.bf16 %v203, %v202
    %v211 = vpack.c.bf16 %v205, %v204
    %v212 = vld [vmem:[%s1 + $0x28] sm:$0xf]
    %v213 = vld [vmem:[%s1 + $0x2c] sm:$0xf]
    %v216 = vunpack.c.l.b16 %v212
    %v217 = vunpack.c.l.b16 %v213
    %v218 = vpack.c.b16 %v217, %v216
    %vm220 = vcmask 130048
    %v222 = vsel %vm220, %v210, 0
    %v225 = vsel %vm220, %v211, 0
    %227 = vmatprep.subr.bf16.mxu0 0
    %228 = vmatpush1.bf16.msra.mxu0 %v218
    %229 = vmatprep.subr.bf16.mxu0 0
    %230 = vmatpush1.bf16.msra.mxu0 0
    %231 = vmatprep.subr.bf16.mxu0 0
    %232 = vmatpush1.bf16.msra.mxu0 0
    %233 = vmatprep.subr.bf16.mxu0 0
    %234 = vmatpush1.bf16.msra.mxu0 0
    %235 = vmatprep.subr.bf16.mxu0 0
    %236 = vmatpush1.bf16.msra.mxu0 0
    %237 = vmatprep.subr.bf16.mxu0 0
    %238 = vmatpush1.bf16.msra.mxu0 0
    %239 = vmatprep.subr.bf16.mxu0 0
    %240 = vmatpush1.bf16.msra.mxu0 0
    %241 = vmatprep.subr.bf16.mxu0 0
    %242 = vmatpush1.bf16.msra.mxu0 0
    %243 = vmatprep.subr.bf16.mxu0 0
    %244 = vmatpush1.bf16.msra.mxu0 0
    %245 = vmatprep.subr.bf16.mxu0 0
    %246 = vmatpush1.bf16.msra.mxu0 0
    %247 = vmatprep.subr.bf16.mxu0 0
    %248 = vmatpush1.bf16.msra.mxu0 0
    %249 = vmatprep.subr.bf16.mxu0 0
    %250 = vmatpush1.bf16.msra.mxu0 0
    %251 = vmatprep.subr.bf16.mxu0 0
    %252 = vmatpush1.bf16.msra.mxu0 0
    %253 = vmatprep.subr.bf16.mxu0 0
    %254 = vmatpush1.bf16.msra.mxu0 0
    %255 = vmatprep.subr.bf16.mxu0 0
    %256 = vmatpush1.bf16.msra.mxu0 0
    %257 = vmatprep.subr.bf16.mxu0 0
    %258 = vmatpush1.bf16.msra.mxu0 0
    %259 = vmatprep.mubr.bf16.mxu0 0
    %260 = vmatmul.mubr.bf16.gmra.mrb[0].mxu0 %v222
    %v261 = vpop.f32.mrb[0].mxu0
    %v262 = vadd.f32 0.0, %v261
    %v263 = vpop.f32.mrb[0].mxu0
    %v264 = vpop.f32.mrb[0].mxu0
    %v265 = vadd.f32 0.0, %v264
    %v266 = vpop.f32.mrb[0].mxu0
    %267 = vmatprep.mubr.bf16.mxu0 0
    %268 = vmatmul.mubr.bf16.gmra.mrb[0].mxu0 %v225
    %v269 = vpop.f32.mrb[0].mxu0
    %v270 = vadd.f32 0.0, %v269
    %v271 = vpop.f32.mrb[0].mxu0
    %v272 = vpop.f32.mrb[0].mxu0
    %v273 = vadd.f32 0.0, %v272
    %v274 = vpop.f32.mrb[0].mxu0
    %275 = vdwg.mxu0
    %v278 = vunpack.c.l.b16 %v208
    %v279 = vunpack.c.l.b16 %v209
    %v280 = vpack.c.b16 %v279, %v278
    %v283 = vsel %vm220, %v206, 0
    %v286 = vsel %vm220, %v207, 0
    %288 = vmatprep.subr.bf16.mxu0 0
    %289 = vmatpush1.bf16.msra.mxu0 %v280
    %290 = vmatprep.subr.bf16.mxu0 0
    %291 = vmatpush1.bf16.msra.mxu0 0
    %292 = vmatprep.subr.bf16.mxu0 0
    %293 = vmatpush1.bf16.msra.mxu0 0
    %294 = vmatprep.subr.bf16.mxu0 0
    %295 = vmatpush1.bf16.msra.mxu0 0
    %296 = vmatprep.subr.bf16.mxu0 0
    %297 = vmatpush1.bf16.msra.mxu0 0
    %298 = vmatprep.subr.bf16.mxu0 0
    %299 = vmatpush1.bf16.msra.mxu0 0
    %300 = vmatprep.subr.bf16.mxu0 0
    %301 = vmatpush1.bf16.msra.mxu0 0
    %302 = vmatprep.subr.bf16.mxu0 0
    %303 = vmatpush1.bf16.msra.mxu0 0
    %304 = vmatprep.subr.bf16.mxu0 0
    %305 = vmatpush1.bf16.msra.mxu0 0
    %306 = vmatprep.subr.bf16.mxu0 0
    %307 = vmatpush1.bf16.msra.mxu0 0
    %308 = vmatprep.subr.bf16.mxu0 0
    %309 = vmatpush1.bf16.msra.mxu0 0
    %310 = vmatprep.subr.bf16.mxu0 0
    %311 = vmatpush1.bf16.msra.mxu0 0
    %312 = vmatprep.subr.bf16.mxu0 0
    %313 = vmatpush1.bf16.msra.mxu0 0
    %314 = vmatprep.subr.bf16.mxu0 0
    %315 = vmatpush1.bf16.msra.mxu0 0
    %316 = vmatprep.subr.bf16.mxu0 0
    %317 = vmatpush1.bf16.msra.mxu0 0
    %318 = vmatprep.subr.bf16.mxu0 0
    %319 = vmatpush1.bf16.msra.mxu0 0
    %320 = vmatprep.mubr.bf16.mxu0 0
    %321 = vmatmul.mubr.bf16.gmra.mrb[0].mxu0 %v283
    %v322 = vpop.f32.mrb[0].mxu0
    %v323 = vadd.f32 %v262, %v322
    %v324 = vpop.f32.mrb[0].mxu0
    %v325 = vpop.f32.mrb[0].mxu0
    %v326 = vadd.f32 %v265, %v325
    %v327 = vpop.f32.mrb[0].mxu0
    %328 = vmatprep.mubr.bf16.mxu0 0
    %329 = vmatmul.mubr.bf16.gmra.mrb[0].mxu0 %v286
    %v330 = vpop.f32.mrb[0].mxu0
    %v331 = vadd.f32 %v270, %v330
    %v332 = vpop.f32.mrb[0].mxu0
    %v333 = vpop.f32.mrb[0].mxu0
    %v334 = vadd.f32 %v273, %v333
    %v335 = vpop.f32.mrb[0].mxu0
    %336 = vdwg.mxu0
    %v337 = vpack.c.bf16 0.0, %v205
    %v338 = vld [vmem:[%s1 + $0x30] sm:$0xf]
    %v339 = vld [vmem:[%s1 + $0x34] sm:$0xf]
    %v342 = vunpack.c.l.b16 %v338
    %v343 = vunpack.c.l.b16 %v339
    %v344 = vpack.c.b16 %v343, %v342
    %v347 = vsel %vm220, %v337, 0
    %349 = vmatprep.subr.bf16.mxu0 0
    %350 = vmatpush1.bf16.msra.mxu0 %v344
    %351 = vmatprep.subr.bf16.mxu0 0
    %352 = vmatpush1.bf16.msra.mxu0 0
    %353 = vmatprep.subr.bf16.mxu0 0
    %354 = vmatpush1.bf16.msra.mxu0 0
    %355 = vmatprep.subr.bf16.mxu0 0
    %356 = vmatpush1.bf16.msra.mxu0 0
    %357 = vmatprep.subr.bf16.mxu0 0
    %358 = vmatpush1.bf16.msra.mxu0 0
    %359 = vmatprep.subr.bf16.mxu0 0
    %360 = vmatpush1.bf16.msra.mxu0 0
    %361 = vmatprep.subr.bf16.mxu0 0
    %362 = vmatpush1.bf16.msra.mxu0 0
    %363 = vmatprep.subr.bf16.mxu0 0
    %364 = vmatpush1.bf16.msra.mxu0 0
    %365 = vmatprep.subr.bf16.mxu0 0
    %366 = vmatpush1.bf16.msra.mxu0 0
    %367 = vmatprep.subr.bf16.mxu0 0
    %368 = vmatpush1.bf16.msra.mxu0 0
    %369 = vmatprep.subr.bf16.mxu0 0
    %370 = vmatpush1.bf16.msra.mxu0 0
    %371 = vmatprep.subr.bf16.mxu0 0
    %372 = vmatpush1.bf16.msra.mxu0 0
    %373 = vmatprep.subr.bf16.mxu0 0
    %374 = vmatpush1.bf16.msra.mxu0 0
    %375 = vmatprep.subr.bf16.mxu0 0
    %376 = vmatpush1.bf16.msra.mxu0 0
    %377 = vmatprep.subr.bf16.mxu0 0
    %378 = vmatpush1.bf16.msra.mxu0 0
    %379 = vmatprep.subr.bf16.mxu0 0
    %380 = vmatpush1.bf16.msra.mxu0 0
    %381 = vmatprep.mubr.bf16.mxu0 0
    %382 = vmatmul.mubr.bf16.gmra.mrb[0].mxu0 %v286
    %v383 = vpop.f32.mrb[0].mxu0
    %v384 = vadd.f32 0.0, %v383
    %v385 = vpop.f32.mrb[0].mxu0
    %v386 = vpop.f32.mrb[0].mxu0
    %v387 = vadd.f32 0.0, %v386
    %v388 = vpop.f32.mrb[0].mxu0
    %389 = vmatprep.mubr.bf16.mxu0 0
    %390 = vmatmul.mubr.bf16.gmra.mrb[0].mxu0 %v347
    %v391 = vpop.f32.mrb[0].mxu0
    %v392 = vadd.f32 0.0, %v391
    %v393 = vpop.f32.mrb[0].mxu0
    %v394 = vpop.f32.mrb[0].mxu0
    %v395 = vadd.f32 0.0, %v394
    %v396 = vpop.f32.mrb[0].mxu0
    %397 = vdwg.mxu0
    %v398 = vadd.f32 %v323, %v384
    %v399 = vadd.f32 %v326, %v387
    %v400 = vadd.f32 %v331, %v392
    %v401 = vadd.f32 %v334, %v395
    %v402 = vlaneseq
    %v403 = vshrl.u32 %v402, 7
    %v404 = vsub.s32 2, %v403
    %v405 = vrot.slane %v18, %v404
    %v406 = vadd.f32 %v398, %v405
    %v407 = vadd.f32 %v399, %v405
    %v408 = vadd.f32 %v400, %v405
    %v409 = vadd.f32 %v401, %v405
    %v410 = vmax.f32 %v406, 0.0
    %v411 = vmax.f32 %v407, 0.0
    %v412 = vmax.f32 %v408, 0.0
    %v413 = vmax.f32 %v409, 0.0
    %v414 = vpack.c.bf16 %v410, 0.0
    %v415 = vpack.c.bf16 %v411, %v410
    %v416 = vpack.c.bf16 %v412, %v411
    %v417 = vpack.c.bf16 %v413, %v412
    %v418 = vpack.c.bf16 0.0, %v413
    %v419 = vld [vmem:[%s1 + $0x38] sm:$0xf]
    %v420 = vld [vmem:[%s1 + $0x3c] sm:$0xf]
    %v421 = vld [vmem:[%s1 + $0x40] sm:$0xf]
    %v422 = vld [vmem:[%s1 + $0x44] sm:$0xf]
    %v423 = vld [vmem:[%s1 + $0x48] sm:$0xf]
    %v424 = vld [vmem:[%s1 + $0x4c] sm:$0xf]
    %v425 = vld [vmem:[%s1 + $0x50] sm:$0xf]
    %v426 = vld [vmem:[%s1 + $0x54] sm:$0xf]
    %v427 = vld [vmem:[%s1 + $0x58] sm:$0xf]
    %v428 = vld [vmem:[%s1 + $0x5c] sm:$0xf]
    %v429 = vld [vmem:[%s1 + $0x60] sm:$0xf]
    %v430 = vld [vmem:[%s1 + $0x64] sm:$0xf]
    %v431 = vld [vmem:[%s1 + $0x68] sm:$0xf]
    %v432 = vld [vmem:[%s1 + $0x6c] sm:$0xf]
    %v433 = vld [vmem:[%s1 + $0x70] sm:$0xf]
    %v434 = vld [vmem:[%s1 + $0x74] sm:$0xf]
    %v435 = vld [vmem:[%s1 + $0x78] sm:$0xf]
    %v436 = vld [vmem:[%s1 + $0x7c] sm:$0xf]
    %v437 = vld [vmem:[%s1 + $0x80] sm:$0xf]
    %v438 = vld [vmem:[%s1 + $0x84] sm:$0xf]
    %v439 = vld [vmem:[%s1 + $0x88] sm:$0xf]
    %v440 = vld [vmem:[%s1 + $0x8c] sm:$0xf]
    %v441 = vld [vmem:[%s1 + $0x90] sm:$0xf]
    %v442 = vld [vmem:[%s1 + $0x94] sm:$0xf]
    %v443 = vld [vmem:[%s1 + $0x98] sm:$0xf]
    %v444 = vld [vmem:[%s1 + $0x9c] sm:$0xf]
    %v445 = vld [vmem:[%s1 + $0xa0] sm:$0xf]
    %v446 = vld [vmem:[%s1 + $0xa4] sm:$0xf]
    %v447 = vld [vmem:[%s1 + $0xa8] sm:$0xf]
    %v448 = vld [vmem:[%s1 + $0xac] sm:$0xf]
    %v449 = vld [vmem:[%s1 + $0xb0] sm:$0xf]
    %v450 = vld [vmem:[%s1 + $0xb4] sm:$0xf]
    %v451 = vld [vmem:[%s1 + $0xb8] sm:$0xf]
    %v452 = vld [vmem:[%s1 + $0xbc] sm:$0xf]
    %v453 = vld [vmem:[%s1 + $0xc0] sm:$0xf]
    %v454 = vld [vmem:[%s1 + $0xc4] sm:$0xf]
    %v455 = vld [vmem:[%s1 + $0xc8] sm:$0xf]
    %v456 = vld [vmem:[%s1 + $0xcc] sm:$0xf]
    %v457 = vld [vmem:[%s1 + $0xd0] sm:$0xf]
    %v458 = vld [vmem:[%s1 + $0xd4] sm:$0xf]
    %v459 = vld [vmem:[%s1 + $0xd8] sm:$0xf]
    %v460 = vld [vmem:[%s1 + $0xdc] sm:$0xf]
    %v461 = vld [vmem:[%s1 + $0xe0] sm:$0xf]
    %v462 = vld [vmem:[%s1 + $0xe4] sm:$0xf]
    %v463 = vld [vmem:[%s1 + $0xe8] sm:$0xf]
    %v464 = vld [vmem:[%s1 + $0xec] sm:$0xf]
    %v465 = vld [vmem:[%s1 + $0xf0] sm:$0xf]
    %v466 = vld [vmem:[%s1 + $0xf4] sm:$0xf]
    %v467 = vlaneseq
    %v468 = vshrl.u32 %v467, 7
    %v469 = vsub.s32 3, %v468
    %v470 = vrot.slane %v18, %v469
    %v519 = vunpack.c.l.b16 %v419
    %v520 = vunpack.c.l.b16 %v420
    %v521 = vunpack.c.l.b16 %v421
    %v522 = vunpack.c.l.b16 %v422
    %v523 = vunpack.c.l.b16 %v423
    %v524 = vunpack.c.l.b16 %v424
    %v525 = vunpack.c.l.b16 %v425
    %v526 = vunpack.c.l.b16 %v426
    %v527 = vunpack.c.l.b16 %v427
    %v528 = vunpack.c.l.b16 %v428
    %v529 = vunpack.c.l.b16 %v429
    %v530 = vunpack.c.l.b16 %v430
    %v531 = vunpack.c.l.b16 %v431
    %v532 = vunpack.c.l.b16 %v432
    %v533 = vunpack.c.l.b16 %v433
    %v534 = vunpack.c.l.b16 %v434
    %v535 = vunpack.c.l.b16 %v435
    %v536 = vunpack.c.l.b16 %v436
    %v537 = vunpack.c.l.b16 %v437
    %v538 = vunpack.c.l.b16 %v438
    %v539 = vunpack.c.l.b16 %v439
    %v540 = vunpack.c.l.b16 %v440
    %v541 = vunpack.c.l.b16 %v441
    %v542 = vunpack.c.l.b16 %v442
    %v543 = vunpack.c.l.b16 %v443
    %v544 = vunpack.c.l.b16 %v444
    %v545 = vunpack.c.l.b16 %v445
    %v546 = vunpack.c.l.b16 %v446
    %v547 = vunpack.c.l.b16 %v447
    %v548 = vunpack.c.l.b16 %v448
    %v549 = vunpack.c.l.b16 %v449
    %v550 = vunpack.c.l.b16 %v450
    %v551 = vunpack.c.l.b16 %v451
    %v552 = vunpack.c.l.b16 %v452
    %v553 = vunpack.c.l.b16 %v453
    %v554 = vunpack.c.l.b16 %v454
    %v555 = vunpack.c.l.b16 %v455
    %v556 = vunpack.c.l.b16 %v456
    %v557 = vunpack.c.l.b16 %v457
    %v558 = vunpack.c.l.b16 %v458
    %v559 = vunpack.c.l.b16 %v459
    %v560 = vunpack.c.l.b16 %v460
    %v561 = vunpack.c.l.b16 %v461
    %v562 = vunpack.c.l.b16 %v462
    %v563 = vunpack.c.l.b16 %v463
    %v564 = vunpack.c.l.b16 %v464
    %v565 = vunpack.c.l.b16 %v465
    %v566 = vunpack.c.l.b16 %v466
    %v567 = vpack.c.b16 %v520, %v519
    %v568 = vpack.c.b16 %v522, %v521
    %v569 = vpack.c.b16 %v524, %v523
    %v570 = vpack.c.b16 %v526, %v525
    %v571 = vpack.c.b16 %v528, %v527
    %v572 = vpack.c.b16 %v530, %v529
    %v573 = vpack.c.b16 %v532, %v531
    %v574 = vpack.c.b16 %v534, %v533
    %v575 = vpack.c.b16 %v536, %v535
    %v576 = vpack.c.b16 %v538, %v537
    %v577 = vpack.c.b16 %v540, %v539
    %v578 = vpack.c.b16 %v542, %v541
    %v579 = vpack.c.b16 %v544, %v543
    %v580 = vpack.c.b16 %v546, %v545
    %v581 = vpack.c.b16 %v548, %v547
    %v582 = vpack.c.b16 %v550, %v549
    %v583 = vpack.c.b16 %v552, %v551
    %v584 = vpack.c.b16 %v554, %v553
    %v585 = vpack.c.b16 %v556, %v555
    %v586 = vpack.c.b16 %v558, %v557
    %v587 = vpack.c.b16 %v560, %v559
    %v588 = vpack.c.b16 %v562, %v561
    %v589 = vpack.c.b16 %v564, %v563
    %v590 = vpack.c.b16 %v566, %v565
    %615 = vmatprep.subr.bf16.mxu0 0
    %616 = vmatpush1.bf16.msra.mxu0 %v567
    %617 = vmatprep.subr.bf16.mxu0 0
    %618 = vmatpush1.bf16.msra.mxu0 %v568
    %619 = vmatprep.subr.bf16.mxu0 0
    %620 = vmatpush1.bf16.msra.mxu0 %v569
    %621 = vmatprep.subr.bf16.mxu0 0
    %622 = vmatpush1.bf16.msra.mxu0 %v570
    %623 = vmatprep.subr.bf16.mxu0 0
    %624 = vmatpush1.bf16.msra.mxu0 %v571
    %625 = vmatprep.subr.bf16.mxu0 0
    %626 = vmatpush1.bf16.msra.mxu0 %v572
    %627 = vmatprep.subr.bf16.mxu0 0
    %628 = vmatpush1.bf16.msra.mxu0 %v573
    %629 = vmatprep.subr.bf16.mxu0 0
    %630 = vmatpush1.bf16.msra.mxu0 %v574
    %631 = vmatprep.subr.bf16.mxu0 0
    %632 = vmatpush1.bf16.msra.mxu0 %v575
    %633 = vmatprep.subr.bf16.mxu0 0
    %634 = vmatpush1.bf16.msra.mxu0 %v576
    %635 = vmatprep.subr.bf16.mxu0 0
    %636 = vmatpush1.bf16.msra.mxu0 %v577
    %637 = vmatprep.subr.bf16.mxu0 0
    %638 = vmatpush1.bf16.msra.mxu0 %v578
    %639 = vmatprep.subr.bf16.mxu0 0
    %640 = vmatpush1.bf16.msra.mxu0 %v579
    %641 = vmatprep.subr.bf16.mxu0 0
    %642 = vmatpush1.bf16.msra.mxu0 %v580
    %643 = vmatprep.subr.bf16.mxu0 0
    %644 = vmatpush1.bf16.msra.mxu0 %v581
    %645 = vmatprep.subr.bf16.mxu0 0
    %646 = vmatpush1.bf16.msra.mxu0 %v582
    %647 = vmatprep.mubr.bf16.mxu0 %v415
    %648 = vmatmul.mubr.bf16.gmra.mrb[0].mxu0 %v414
    %v649 = vpop.f32.mrb[0].mxu0
    %v650 = vadd.f32 %v470, %v649
    %v651 = vpop.f32.mrb[0].mxu0
    %v652 = vpop.f32.mrb[0].mxu0
    %v653 = vadd.f32 %v470, %v652
    %v654 = vpop.f32.mrb[0].mxu0
    %655 = vmatprep.mubr.bf16.mxu0 %v417
    %656 = vmatmul.mubr.bf16.gmra.mrb[0].mxu0 %v416
    %v657 = vpop.f32.mrb[0].mxu0
    %v658 = vadd.f32 %v470, %v657
    %v659 = vpop.f32.mrb[0].mxu0
    %v660 = vpop.f32.mrb[0].mxu0
    %v661 = vadd.f32 %v470, %v660
    %v662 = vpop.f32.mrb[0].mxu0
    %663 = vdwg.mxu0
    %664 = vmatprep.subr.bf16.mxu0 0
    %665 = vmatpush1.bf16.msra.mxu0 %v583
    %666 = vmatprep.subr.bf16.mxu0 0
    %667 = vmatpush1.bf16.msra.mxu0 %v584
    %668 = vmatprep.subr.bf16.mxu0 0
    %669 = vmatpush1.bf16.msra.mxu0 %v585
    %670 = vmatprep.subr.bf16.mxu0 0
    %671 = vmatpush1.bf16.msra.mxu0 %v586
    %672 = vmatprep.subr.bf16.mxu0 0
    %673 = vmatpush1.bf16.msra.mxu0 %v587
    %674 = vmatprep.subr.bf16.mxu0 0
    %675 = vmatpush1.bf16.msra.mxu0 %v588
    %676 = vmatprep.subr.bf16.mxu0 0
    %677 = vmatpush1.bf16.msra.mxu0 %v589
    %678 = vmatprep.subr.bf16.mxu0 0
    %679 = vmatpush1.bf16.msra.mxu0 %v590
    %680 = vmatprep.subr.bf16.mxu0 0
    %681 = vmatpush1.bf16.msra.mxu0 0
    %682 = vmatprep.subr.bf16.mxu0 0
    %683 = vmatpush1.bf16.msra.mxu0 0
    %684 = vmatprep.subr.bf16.mxu0 0
    %685 = vmatpush1.bf16.msra.mxu0 0
    %686 = vmatprep.subr.bf16.mxu0 0
    %687 = vmatpush1.bf16.msra.mxu0 0
    %688 = vmatprep.subr.bf16.mxu0 0
    %689 = vmatpush1.bf16.msra.mxu0 0
    %690 = vmatprep.subr.bf16.mxu0 0
    %691 = vmatpush1.bf16.msra.mxu0 0
    %692 = vmatprep.subr.bf16.mxu0 0
    %693 = vmatpush1.bf16.msra.mxu0 0
    %694 = vmatprep.subr.bf16.mxu0 0
    %695 = vmatpush1.bf16.msra.mxu0 0
    %696 = vmatprep.mubr.bf16.mxu0 0
    %697 = vmatmul.mubr.bf16.gmra.mrb[0].mxu0 %v416
    %v698 = vpop.f32.mrb[0].mxu0
    %v699 = vadd.f32 %v650, %v698
    %v700 = vpop.f32.mrb[0].mxu0
    %v701 = vpop.f32.mrb[0].mxu0
    %v702 = vadd.f32 %v653, %v701
    %v703 = vpop.f32.mrb[0].mxu0
    %704 = vmatprep.mubr.bf16.mxu0 0
    %705 = vmatmul.mubr.bf16.gmra.mrb[0].mxu0 %v418
    %v706 = vpop.f32.mrb[0].mxu0
    %v707 = vadd.f32 %v658, %v706
    %v708 = vpop.f32.mrb[0].mxu0
    %v709 = vpop.f32.mrb[0].mxu0
    %v710 = vadd.f32 %v661, %v709
    %v711 = vpop.f32.mrb[0].mxu0
    %712 = vdwg.mxu0
    %v713 = vmax.f32 %v699, 0.0
    %v714 = vmax.f32 %v702, 0.0
    %v715 = vmax.f32 %v707, 0.0
    %v716 = vmax.f32 %v710, 0.0
    %v717 = vpack.c.bf16 %v714, %v713
    %v718 = vpack.c.bf16 %v716, %v715
    %v719 = vld [vmem:[%s1 + $0xf8] sm:$0xf]
    %v720 = vld [vmem:[%s1 + $0xfc] sm:$0xf]
    %v721 = vld [vmem:[%s1 + $0x100] sm:$0xf]
    %v722 = vld [vmem:[%s1 + $0x104] sm:$0xf]
    %v723 = vld [vmem:[%s1 + $0x108] sm:$0xf]
    %v724 = vld [vmem:[%s1 + $0x10c] sm:$0xf]
    %v725 = vld [vmem:[%s1 + $0x110] sm:$0xf]
    %v726 = vld [vmem:[%s1 + $0x114] sm:$0xf]
    %v727 = vld [vmem:[%s1 + $0x118] sm:$0xf]
    %v728 = vld [vmem:[%s1 + $0x11c] sm:$0xf]
    %v729 = vld [vmem:[%s1 + $0x120] sm:$0xf]
    %v730 = vld [vmem:[%s1 + $0x124] sm:$0xf]
    %v731 = vld [vmem:[%s1 + $0x128] sm:$0xf]
    %v732 = vld [vmem:[%s1 + $0x12c] sm:$0xf]
    %v733 = vld [vmem:[%s1 + $0x130] sm:$0xf]
    %v734 = vld [vmem:[%s1 + $0x134] sm:$0xf]
    %v751 = vunpack.c.l.b16 %v719
    %v752 = vunpack.c.l.b16 %v720
    %v753 = vunpack.c.l.b16 %v721
    %v754 = vunpack.c.l.b16 %v722
    %v755 = vunpack.c.l.b16 %v723
    %v756 = vunpack.c.l.b16 %v724
    %v757 = vunpack.c.l.b16 %v725
    %v758 = vunpack.c.l.b16 %v726
    %v759 = vunpack.c.l.b16 %v727
    %v760 = vunpack.c.l.b16 %v728
    %v761 = vunpack.c.l.b16 %v729
    %v762 = vunpack.c.l.b16 %v730
    %v763 = vunpack.c.l.b16 %v731
    %v764 = vunpack.c.l.b16 %v732
    %v765 = vunpack.c.l.b16 %v733
    %v766 = vunpack.c.l.b16 %v734
    %v767 = vpack.c.b16 %v752, %v751
    %v768 = vpack.c.b16 %v754, %v753
    %v769 = vpack.c.b16 %v756, %v755
    %v770 = vpack.c.b16 %v758, %v757
    %v771 = vpack.c.b16 %v760, %v759
    %v772 = vpack.c.b16 %v762, %v761
    %v773 = vpack.c.b16 %v764, %v763
    %v774 = vpack.c.b16 %v766, %v765
    %783 = vmatprep.subr.bf16.mxu0 0
    %784 = vmatpush1.bf16.msra.mxu0 %v767
    %785 = vmatprep.subr.bf16.mxu0 0
    %786 = vmatpush1.bf16.msra.mxu0 %v768
    %787 = vmatprep.subr.bf16.mxu0 0
    %788 = vmatpush1.bf16.msra.mxu0 %v769
    %789 = vmatprep.subr.bf16.mxu0 0
    %790 = vmatpush1.bf16.msra.mxu0 %v770
    %791 = vmatprep.subr.bf16.mxu0 0
    %792 = vmatpush1.bf16.msra.mxu0 %v771
    %793 = vmatprep.subr.bf16.mxu0 0
    %794 = vmatpush1.bf16.msra.mxu0 %v772
    %795 = vmatprep.subr.bf16.mxu0 0
    %796 = vmatpush1.bf16.msra.mxu0 %v773
    %797 = vmatprep.subr.bf16.mxu0 0
    %798 = vmatpush1.bf16.msra.mxu0 %v774
    %799 = vmatprep.subr.bf16.mxu0 0
    %800 = vmatpush1.bf16.msra.mxu0 0
    %801 = vmatprep.subr.bf16.mxu0 0
    %802 = vmatpush1.bf16.msra.mxu0 0
    %803 = vmatprep.subr.bf16.mxu0 0
    %804 = vmatpush1.bf16.msra.mxu0 0
    %805 = vmatprep.subr.bf16.mxu0 0
    %806 = vmatpush1.bf16.msra.mxu0 0
    %807 = vmatprep.subr.bf16.mxu0 0
    %808 = vmatpush1.bf16.msra.mxu0 0
    %809 = vmatprep.subr.bf16.mxu0 0
    %810 = vmatpush1.bf16.msra.mxu0 0
    %811 = vmatprep.subr.bf16.mxu0 0
    %812 = vmatpush1.bf16.msra.mxu0 0
    %813 = vmatprep.subr.bf16.mxu0 0
    %814 = vmatpush1.bf16.msra.mxu0 0
    %815 = vmatprep.mubr.bf16.mxu0 0
    %816 = vmatmul.mubr.bf16.gmra.mrb[0].mxu0 %v717
    %v817 = vpop.f32.mrb[0].mxu0
    %v818 = vadd.f32 0.0, %v817
    %v819 = vpop.f32.mrb[0].mxu0
    %v820 = vpop.f32.mrb[0].mxu0
    %v821 = vadd.f32 0.0, %v820
    %v822 = vpop.f32.mrb[0].mxu0
    %823 = vmatprep.mubr.bf16.mxu0 0
    %824 = vmatmul.mubr.bf16.gmra.mrb[0].mxu0 %v718
    %v825 = vpop.f32.mrb[0].mxu0
    %v826 = vadd.f32 0.0, %v825
    %v827 = vpop.f32.mrb[0].mxu0
    %v828 = vpop.f32.mrb[0].mxu0
    %v829 = vadd.f32 0.0, %v828
    %v830 = vpop.f32.mrb[0].mxu0
    %831 = vdwg.mxu0
    %832 = vst.msk [vmem:[%s3] sm:$0xff] %vm220, %v202
    %833 = vst.msk [vmem:[%s3 + $0x8] sm:$0xff] %vm220, %v203
    %834 = vst.msk [vmem:[%s3 + $0x10] sm:$0xff] %vm220, %v204
    %835 = vst.msk [vmem:[%s3 + $0x18] sm:$0xff] %vm220, %v205
    %s836 = scalar_lea.vmem %s3, 32
    %837 = vst.msk [vmem:[%s836] sm:$0xff] %vm220, %v818
    %838 = vst.msk [vmem:[%s836 + $0x8] sm:$0xff] %vm220, %v821
    %839 = vst.msk [vmem:[%s836 + $0x10] sm:$0xff] %vm220, %v826
    %840 = vst.msk [vmem:[%s836 + $0x18] sm:$0xff] %vm220, %v829
    %v841 = vpack.c.bf16 %v713, %v713
    %v842 = vpack.c.bf16 %v714, %v714
    %v843 = vpack.c.bf16 %v715, %v715
    %v844 = vpack.c.bf16 %v716, %v716
    %v845 = vld [vmem:[%s1 + $0x138] sm:$0xf]
    %v846 = vld [vmem:[%s1 + $0x13c] sm:$0xf]
    %v847 = vld [vmem:[%s1 + $0x140] sm:$0xf]
    %v848 = vld [vmem:[%s1 + $0x144] sm:$0xf]
    %v849 = vld [vmem:[%s1 + $0x148] sm:$0xf]
    %v850 = vld [vmem:[%s1 + $0x14c] sm:$0xf]
    %v851 = vld [vmem:[%s1 + $0x150] sm:$0xf]
    %v852 = vld [vmem:[%s1 + $0x154] sm:$0xf]
    %v853 = vld [vmem:[%s1 + $0x158] sm:$0xf]
    %v854 = vld [vmem:[%s1 + $0x15c] sm:$0xf]
    %v855 = vld [vmem:[%s1 + $0x160] sm:$0xf]
    %v856 = vld [vmem:[%s1 + $0x164] sm:$0xf]
    %v857 = vld [vmem:[%s1 + $0x168] sm:$0xf]
    %v858 = vld [vmem:[%s1 + $0x16c] sm:$0xf]
    %v859 = vld [vmem:[%s1 + $0x170] sm:$0xf]
    %v860 = vld [vmem:[%s1 + $0x174] sm:$0xf]
    %v861 = vld [vmem:[%s1 + $0x178] sm:$0xf]
    %v862 = vld [vmem:[%s1 + $0x17c] sm:$0xf]
    %v863 = vld [vmem:[%s1 + $0x180] sm:$0xf]
    %v864 = vld [vmem:[%s1 + $0x184] sm:$0xf]
    %v865 = vld [vmem:[%s1 + $0x188] sm:$0xf]
    %v866 = vld [vmem:[%s1 + $0x18c] sm:$0xf]
    %v867 = vld [vmem:[%s1 + $0x190] sm:$0xf]
    %v868 = vld [vmem:[%s1 + $0x194] sm:$0xf]
    %v869 = vld [vmem:[%s1 + $0x198] sm:$0xf]
    %v870 = vld [vmem:[%s1 + $0x19c] sm:$0xf]
    %v871 = vld [vmem:[%s1 + $0x1a0] sm:$0xf]
    %v872 = vld [vmem:[%s1 + $0x1a4] sm:$0xf]
    %v873 = vld [vmem:[%s1 + $0x1a8] sm:$0xf]
    %v874 = vld [vmem:[%s1 + $0x1ac] sm:$0xf]
    %v875 = vld [vmem:[%s1 + $0x1b0] sm:$0xf]
    %v876 = vld [vmem:[%s1 + $0x1b4] sm:$0xf]
    %v877 = vld [vmem:[%s1 + $0x1b8] sm:$0xf]
    %v878 = vld [vmem:[%s1 + $0x1bc] sm:$0xf]
    %v879 = vld [vmem:[%s1 + $0x1c0] sm:$0xf]
    %v880 = vld [vmem:[%s1 + $0x1c4] sm:$0xf]
    %v881 = vld [vmem:[%s1 + $0x1c8] sm:$0xf]
    %v882 = vld [vmem:[%s1 + $0x1cc] sm:$0xf]
    %v883 = vld [vmem:[%s1 + $0x1d0] sm:$0xf]
    %v884 = vld [vmem:[%s1 + $0x1d4] sm:$0xf]
    %v885 = vld [vmem:[%s1 + $0x1d8] sm:$0xf]
    %v886 = vld [vmem:[%s1 + $0x1dc] sm:$0xf]
    %v887 = vld [vmem:[%s1 + $0x1e0] sm:$0xf]
    %v888 = vld [vmem:[%s1 + $0x1e4] sm:$0xf]
    %v889 = vld [vmem:[%s1 + $0x1e8] sm:$0xf]
    %v890 = vld [vmem:[%s1 + $0x1ec] sm:$0xf]
    %v891 = vld [vmem:[%s1 + $0x1f0] sm:$0xf]
    %v892 = vld [vmem:[%s1 + $0x1f4] sm:$0xf]
    %v893 = vld [vmem:[%s1 + $0x1f8] sm:$0xf]
    %v894 = vld [vmem:[%s1 + $0x1fc] sm:$0xf]
    %v895 = vld [vmem:[%s1 + $0x200] sm:$0xf]
    %v896 = vld [vmem:[%s1 + $0x204] sm:$0xf]
    %v897 = vld [vmem:[%s1 + $0x208] sm:$0xf]
    %v898 = vld [vmem:[%s1 + $0x20c] sm:$0xf]
    %v899 = vld [vmem:[%s1 + $0x210] sm:$0xf]
    %v900 = vld [vmem:[%s1 + $0x214] sm:$0xf]
    %v901 = vld [vmem:[%s1 + $0x218] sm:$0xf]
    %v902 = vld [vmem:[%s1 + $0x21c] sm:$0xf]
    %v903 = vld [vmem:[%s1 + $0x220] sm:$0xf]
    %v904 = vld [vmem:[%s1 + $0x224] sm:$0xf]
    %v905 = vld [vmem:[%s1 + $0x228] sm:$0xf]
    %v906 = vld [vmem:[%s1 + $0x22c] sm:$0xf]
    %v907 = vld [vmem:[%s1 + $0x230] sm:$0xf]
    %v908 = vld [vmem:[%s1 + $0x234] sm:$0xf]
    %v909 = vlaneseq
    %v910 = vshrl.u32 %v909, 7
    %v911 = vsub.s32 4, %v910
    %v912 = vrot.slane %v18, %v911
    %v977 = vunpack.c.l.b16 %v845
    %v978 = vunpack.c.l.b16 %v846
    %v979 = vunpack.c.l.b16 %v847
    %v980 = vunpack.c.l.b16 %v848
    %v981 = vunpack.c.l.b16 %v849
    %v982 = vunpack.c.l.b16 %v850
    %v983 = vunpack.c.l.b16 %v851
    %v984 = vunpack.c.l.b16 %v852
    %v985 = vunpack.c.l.b16 %v853
    %v986 = vunpack.c.l.b16 %v854
    %v987 = vunpack.c.l.b16 %v855
    %v988 = vunpack.c.l.b16 %v856
    %v989 = vunpack.c.l.b16 %v857
    %v990 = vunpack.c.l.b16 %v858
    %v991 = vunpack.c.l.b16 %v859
    %v992 = vunpack.c.l.b16 %v860
    %v993 = vunpack.c.l.b16 %v861
    %v994 = vunpack.c.l.b16 %v862
    %v995 = vunpack.c.l.b16 %v863
    %v996 = vunpack.c.l.b16 %v864
    %v997 = vunpack.c.l.b16 %v865
    %v998 = vunpack.c.l.b16 %v866
    %v999 = vunpack.c.l.b16 %v867
    %v1000 = vunpack.c.l.b16 %v868
    %v1001 = vunpack.c.l.b16 %v869
    %v1002 = vunpack.c.l.b16 %v870
    %v1003 = vunpack.c.l.b16 %v871
    %v1004 = vunpack.c.l.b16 %v872
    %v1005 = vunpack.c.l.b16 %v873
    %v1006 = vunpack.c.l.b16 %v874
    %v1007 = vunpack.c.l.b16 %v875
    %v1008 = vunpack.c.l.b16 %v876
    %v1009 = vunpack.c.l.b16 %v877
    %v1010 = vunpack.c.l.b16 %v878
    %v1011 = vunpack.c.l.b16 %v879
    %v1012 = vunpack.c.l.b16 %v880
    %v1013 = vunpack.c.l.b16 %v881
    %v1014 = vunpack.c.l.b16 %v882
    %v1015 = vunpack.c.l.b16 %v883
    %v1016 = vunpack.c.l.b16 %v884
    %v1017 = vunpack.c.l.b16 %v885
    %v1018 = vunpack.c.l.b16 %v886
    %v1019 = vunpack.c.l.b16 %v887
    %v1020 = vunpack.c.l.b16 %v888
    %v1021 = vunpack.c.l.b16 %v889
    %v1022 = vunpack.c.l.b16 %v890
    %v1023 = vunpack.c.l.b16 %v891
    %v1024 = vunpack.c.l.b16 %v892
    %v1025 = vunpack.c.l.b16 %v893
    %v1026 = vunpack.c.l.b16 %v894
    %v1027 = vunpack.c.l.b16 %v895
    %v1028 = vunpack.c.l.b16 %v896
    %v1029 = vunpack.c.l.b16 %v897
    %v1030 = vunpack.c.l.b16 %v898
    %v1031 = vunpack.c.l.b16 %v899
    %v1032 = vunpack.c.l.b16 %v900
    %v1033 = vunpack.c.l.b16 %v901
    %v1034 = vunpack.c.l.b16 %v902
    %v1035 = vunpack.c.l.b16 %v903
    %v1036 = vunpack.c.l.b16 %v904
    %v1037 = vunpack.c.l.b16 %v905
    %v1038 = vunpack.c.l.b16 %v906
    %v1039 = vunpack.c.l.b16 %v907
    %v1040 = vunpack.c.l.b16 %v908
    %v1041 = vpack.c.b16 %v978, %v977
    %v1042 = vpack.c.b16 %v980, %v979
    %v1043 = vpack.c.b16 %v982, %v981
    %v1044 = vpack.c.b16 %v984, %v983
    %v1045 = vpack.c.b16 %v986, %v985
    %v1046 = vpack.c.b16 %v988, %v987
    %v1047 = vpack.c.b16 %v990, %v989
    %v1048 = vpack.c.b16 %v992, %v991
    %v1049 = vpack.c.b16 %v994, %v993
    %v1050 = vpack.c.b16 %v996, %v995
    %v1051 = vpack.c.b16 %v998, %v997
    %v1052 = vpack.c.b16 %v1000, %v999
    %v1053 = vpack.c.b16 %v1002, %v1001
    %v1054 = vpack.c.b16 %v1004, %v1003
    %v1055 = vpack.c.b16 %v1006, %v1005
    %v1056 = vpack.c.b16 %v1008, %v1007
    %v1057 = vpack.c.b16 %v1010, %v1009
    %v1058 = vpack.c.b16 %v1012, %v1011
    %v1059 = vpack.c.b16 %v1014, %v1013
    %v1060 = vpack.c.b16 %v1016, %v1015
    %v1061 = vpack.c.b16 %v1018, %v1017
    %v1062 = vpack.c.b16 %v1020, %v1019
    %v1063 = vpack.c.b16 %v1022, %v1021
    %v1064 = vpack.c.b16 %v1024, %v1023
    %v1065 = vpack.c.b16 %v1026, %v1025
    %v1066 = vpack.c.b16 %v1028, %v1027
    %v1067 = vpack.c.b16 %v1030, %v1029
    %v1068 = vpack.c.b16 %v1032, %v1031
    %v1069 = vpack.c.b16 %v1034, %v1033
    %v1070 = vpack.c.b16 %v1036, %v1035
    %v1071 = vpack.c.b16 %v1038, %v1037
    %v1072 = vpack.c.b16 %v1040, %v1039
    %1105 = vmatprep.subr.bf16.mxu0 0
    %1106 = vmatpush1.bf16.msra.mxu0 %v1041
    %1107 = vmatprep.subr.bf16.mxu0 0
    %1108 = vmatpush1.bf16.msra.mxu0 %v1042
    %1109 = vmatprep.subr.bf16.mxu0 0
    %1110 = vmatpush1.bf16.msra.mxu0 %v1043
    %1111 = vmatprep.subr.bf16.mxu0 0
    %1112 = vmatpush1.bf16.msra.mxu0 %v1044
    %1113 = vmatprep.subr.bf16.mxu0 0
    %1114 = vmatpush1.bf16.msra.mxu0 %v1045
    %1115 = vmatprep.subr.bf16.mxu0 0
    %1116 = vmatpush1.bf16.msra.mxu0 %v1046
    %1117 = vmatprep.subr.bf16.mxu0 0
    %1118 = vmatpush1.bf16.msra.mxu0 %v1047
    %1119 = vmatprep.subr.bf16.mxu0 0
    %1120 = vmatpush1.bf16.msra.mxu0 %v1048
    %1121 = vmatprep.subr.bf16.mxu0 0
    %1122 = vmatpush1.bf16.msra.mxu0 %v1049
    %1123 = vmatprep.subr.bf16.mxu0 0
    %1124 = vmatpush1.bf16.msra.mxu0 %v1050
    %1125 = vmatprep.subr.bf16.mxu0 0
    %1126 = vmatpush1.bf16.msra.mxu0 %v1051
    %1127 = vmatprep.subr.bf16.mxu0 0
    %1128 = vmatpush1.bf16.msra.mxu0 %v1052
    %1129 = vmatprep.subr.bf16.mxu0 0
    %1130 = vmatpush1.bf16.msra.mxu0 %v1053
    %1131 = vmatprep.subr.bf16.mxu0 0
    %1132 = vmatpush1.bf16.msra.mxu0 %v1054
    %1133 = vmatprep.subr.bf16.mxu0 0
    %1134 = vmatpush1.bf16.msra.mxu0 %v1055
    %1135 = vmatprep.subr.bf16.mxu0 0
    %1136 = vmatpush1.bf16.msra.mxu0 %v1056
    %1137 = vmatprep.mubr.bf16.mxu0 %v842
    %1138 = vmatmul.mubr.bf16.gmra.mrb[0].mxu0 %v841
    %v1139 = vpop.f32.mrb[0].mxu0
    %v1140 = vadd.f32 %v912, %v1139
    %v1141 = vpop.f32.mrb[0].mxu0
    %v1142 = vpop.f32.mrb[0].mxu0
    %v1143 = vpop.f32.mrb[0].mxu0
    %1144 = vdwg.mxu0
    %1145 = vmatprep.subr.bf16.mxu0 0
    %1146 = vmatpush1.bf16.msra.mxu0 %v1057
    %1147 = vmatprep.subr.bf16.mxu0 0
    %1148 = vmatpush1.bf16.msra.mxu0 %v1058
    %1149 = vmatprep.subr.bf16.mxu0 0
    %1150 = vmatpush1.bf16.msra.mxu0 %v1059
    %1151 = vmatprep.subr.bf16.mxu0 0
    %1152 = vmatpush1.bf16.msra.mxu0 %v1060
    %1153 = vmatprep.subr.bf16.mxu0 0
    %1154 = vmatpush1.bf16.msra.mxu0 %v1061
    %1155 = vmatprep.subr.bf16.mxu0 0
    %1156 = vmatpush1.bf16.msra.mxu0 %v1062
    %1157 = vmatprep.subr.bf16.mxu0 0
    %1158 = vmatpush1.bf16.msra.mxu0 %v1063
    %1159 = vmatprep.subr.bf16.mxu0 0
    %1160 = vmatpush1.bf16.msra.mxu0 %v1064
    %1161 = vmatprep.subr.bf16.mxu0 0
    %1162 = vmatpush1.bf16.msra.mxu0 %v1065
    %1163 = vmatprep.subr.bf16.mxu0 0
    %1164 = vmatpush1.bf16.msra.mxu0 %v1066
    %1165 = vmatprep.subr.bf16.mxu0 0
    %1166 = vmatpush1.bf16.msra.mxu0 %v1067
    %1167 = vmatprep.subr.bf16.mxu0 0
    %1168 = vmatpush1.bf16.msra.mxu0 %v1068
    %1169 = vmatprep.subr.bf16.mxu0 0
    %1170 = vmatpush1.bf16.msra.mxu0 %v1069
    %1171 = vmatprep.subr.bf16.mxu0 0
    %1172 = vmatpush1.bf16.msra.mxu0 %v1070
    %1173 = vmatprep.subr.bf16.mxu0 0
    %1174 = vmatpush1.bf16.msra.mxu0 %v1071
    %1175 = vmatprep.subr.bf16.mxu0 0
    %1176 = vmatpush1.bf16.msra.mxu0 %v1072
    %1177 = vmatprep.mubr.bf16.mxu0 %v844
    %1178 = vmatmul.mubr.bf16.gmra.mrb[0].mxu0 %v843
    %v1179 = vpop.f32.mrb[0].mxu0
    %v1180 = vadd.f32 %v1140, %v1179
    %v1181 = vpop.f32.mrb[0].mxu0
    %v1182 = vpop.f32.mrb[0].mxu0
    %v1183 = vpop.f32.mrb[0].mxu0
    %1184 = vdwg.mxu0
    %v1185 = vmax.f32 %v1180, 0.0
    %v1186 = vpack.c.bf16 %v1185, %v1185
    %v1187 = vld [vmem:[%s1 + $0x238] sm:$0xf]
    %v1188 = vld [vmem:[%s1 + $0x23c] sm:$0xf]
    %v1189 = vld [vmem:[%s1 + $0x240] sm:$0xf]
    %v1190 = vld [vmem:[%s1 + $0x244] sm:$0xf]
    %v1191 = vlaneseq
    %v1192 = vshrl.u32 %v1191, 7
    %v1193 = vsub.s32 5, %v1192
    %v1194 = vrot.slane %v18, %v1193
    %v1199 = vunpack.c.l.b16 %v1187
    %v1200 = vunpack.c.l.b16 %v1188
    %v1201 = vunpack.c.l.b16 %v1189
    %v1202 = vunpack.c.l.b16 %v1190
    %v1203 = vpack.c.b16 %v1200, %v1199
    %v1204 = vpack.c.b16 %v1202, %v1201
    %v1208 = vsel %vm45, %v1186, 0
    %1210 = vmatprep.subr.bf16.mxu0 0
    %1211 = vmatpush1.bf16.msra.mxu0 %v1203
    %1212 = vmatprep.subr.bf16.mxu0 0
    %1213 = vmatpush1.bf16.msra.mxu0 %v1204
    %1214 = vmatprep.subr.bf16.mxu0 0
    %1215 = vmatpush1.bf16.msra.mxu0 0
    %1216 = vmatprep.subr.bf16.mxu0 0
    %1217 = vmatpush1.bf16.msra.mxu0 0
    %1218 = vmatprep.subr.bf16.mxu0 0
    %1219 = vmatpush1.bf16.msra.mxu0 0
    %1220 = vmatprep.subr.bf16.mxu0 0
    %1221 = vmatpush1.bf16.msra.mxu0 0
    %1222 = vmatprep.subr.bf16.mxu0 0
    %1223 = vmatpush1.bf16.msra.mxu0 0
    %1224 = vmatprep.subr.bf16.mxu0 0
    %1225 = vmatpush1.bf16.msra.mxu0 0
    %1226 = vmatprep.subr.bf16.mxu0 0
    %1227 = vmatpush1.bf16.msra.mxu0 0
    %1228 = vmatprep.subr.bf16.mxu0 0
    %1229 = vmatpush1.bf16.msra.mxu0 0
    %1230 = vmatprep.subr.bf16.mxu0 0
    %1231 = vmatpush1.bf16.msra.mxu0 0
    %1232 = vmatprep.subr.bf16.mxu0 0
    %1233 = vmatpush1.bf16.msra.mxu0 0
    %1234 = vmatprep.subr.bf16.mxu0 0
    %1235 = vmatpush1.bf16.msra.mxu0 0
    %1236 = vmatprep.subr.bf16.mxu0 0
    %1237 = vmatpush1.bf16.msra.mxu0 0
    %1238 = vmatprep.subr.bf16.mxu0 0
    %1239 = vmatpush1.bf16.msra.mxu0 0
    %1240 = vmatprep.subr.bf16.mxu0 0
    %1241 = vmatpush1.bf16.msra.mxu0 0
    %1242 = vmatprep.mubr.bf16.mxu0 0
    %1243 = vmatmul.mubr.bf16.gmra.mrb[0].mxu0 %v1208
    %v1244 = vpop.f32.mrb[0].mxu0
    %v1245 = vadd.f32 %v1194, %v1244
    %v1246 = vpop.f32.mrb[0].mxu0
    %v1247 = vpop.f32.mrb[0].mxu0
    %v1248 = vpop.f32.mrb[0].mxu0
    %1249 = vdwg.mxu0
    %v1250 = vpack.c.bf16 %v1245, %v1245
    %v1251 = vld [vmem:[%s1 + $0x248] sm:$0xf]
    %v1252 = vld [vmem:[%s1 + $0x24c] sm:$0xf]
    %v1253 = vlaneseq
    %v1254 = vshrl.u32 %v1253, 7
    %v1255 = vsub.s32 6, %v1254
    %v1256 = vrot.slane %v18, %v1255
    %v1259 = vunpack.c.l.b16 %v1251
    %v1260 = vunpack.c.l.b16 %v1252
    %v1261 = vpack.c.b16 %v1260, %v1259
    %v1264 = vsel %vm220, %v1250, 0
    %1266 = vmatprep.subr.bf16.mxu0 0
    %1267 = vmatpush1.bf16.msra.mxu0 %v1261
    %1268 = vmatprep.subr.bf16.mxu0 0
    %1269 = vmatpush1.bf16.msra.mxu0 0
    %1270 = vmatprep.subr.bf16.mxu0 0
    %1271 = vmatpush1.bf16.msra.mxu0 0
    %1272 = vmatprep.subr.bf16.mxu0 0
    %1273 = vmatpush1.bf16.msra.mxu0 0
    %1274 = vmatprep.subr.bf16.mxu0 0
    %1275 = vmatpush1.bf16.msra.mxu0 0
    %1276 = vmatprep.subr.bf16.mxu0 0
    %1277 = vmatpush1.bf16.msra.mxu0 0
    %1278 = vmatprep.subr.bf16.mxu0 0
    %1279 = vmatpush1.bf16.msra.mxu0 0
    %1280 = vmatprep.subr.bf16.mxu0 0
    %1281 = vmatpush1.bf16.msra.mxu0 0
    %1282 = vmatprep.subr.bf16.mxu0 0
    %1283 = vmatpush1.bf16.msra.mxu0 0
    %1284 = vmatprep.subr.bf16.mxu0 0
    %1285 = vmatpush1.bf16.msra.mxu0 0
    %1286 = vmatprep.subr.bf16.mxu0 0
    %1287 = vmatpush1.bf16.msra.mxu0 0
    %1288 = vmatprep.subr.bf16.mxu0 0
    %1289 = vmatpush1.bf16.msra.mxu0 0
    %1290 = vmatprep.subr.bf16.mxu0 0
    %1291 = vmatpush1.bf16.msra.mxu0 0
    %1292 = vmatprep.subr.bf16.mxu0 0
    %1293 = vmatpush1.bf16.msra.mxu0 0
    %1294 = vmatprep.subr.bf16.mxu0 0
    %1295 = vmatpush1.bf16.msra.mxu0 0
    %1296 = vmatprep.subr.bf16.mxu0 0
    %1297 = vmatpush1.bf16.msra.mxu0 0
    %1298 = vmatprep.mubr.bf16.mxu0 0
    %1299 = vmatmul.mubr.bf16.gmra.mrb[0].mxu0 %v1264
    %v1300 = vpop.f32.mrb[0].mxu0
    %v1301 = vadd.f32 %v1256, %v1300
    %v1302 = vpop.f32.mrb[0].mxu0
    %v1303 = vpop.f32.mrb[0].mxu0
    %v1304 = vpop.f32.mrb[0].mxu0
    %1305 = vdwg.mxu0
    %v1306 = vmax.f32 %v1301, 0.0
    %v1307 = vpack.c.bf16 %v1306, %v1306
    %v1308 = vld [vmem:[%s1 + $0x250] sm:$0xf]
    %v1309 = vld [vmem:[%s1 + $0x254] sm:$0xf]
    %v1310 = vld [vmem:[%s1 + $0x258] sm:$0xf]
    %v1311 = vld [vmem:[%s1 + $0x25c] sm:$0xf]
    %v1312 = vlaneseq
    %v1313 = vshrl.u32 %v1312, 7
    %v1314 = vsub.s32 7, %v1313
    %v1315 = vrot.slane %v18, %v1314
    %v1320 = vunpack.c.l.b16 %v1308
    %v1321 = vunpack.c.l.b16 %v1309
    %v1322 = vunpack.c.l.b16 %v1310
    %v1323 = vunpack.c.l.b16 %v1311
    %v1324 = vpack.c.b16 %v1321, %v1320
    %v1325 = vpack.c.b16 %v1323, %v1322
    %v1329 = vsel %vm45, %v1307, 0
    %1331 = vmatprep.subr.bf16.mxu0 0
    %1332 = vmatpush1.bf16.msra.mxu0 %v1324
    %1333 = vmatprep.subr.bf16.mxu0 0
    %1334 = vmatpush1.bf16.msra.mxu0 %v1325
    %1335 = vmatprep.subr.bf16.mxu0 0
    %1336 = vmatpush1.bf16.msra.mxu0 0
    %1337 = vmatprep.subr.bf16.mxu0 0
    %1338 = vmatpush1.bf16.msra.mxu0 0
    %1339 = vmatprep.subr.bf16.mxu0 0
    %1340 = vmatpush1.bf16.msra.mxu0 0
    %1341 = vmatprep.subr.bf16.mxu0 0
    %1342 = vmatpush1.bf16.msra.mxu0 0
    %1343 = vmatprep.subr.bf16.mxu0 0
    %1344 = vmatpush1.bf16.msra.mxu0 0
    %1345 = vmatprep.subr.bf16.mxu0 0
    %1346 = vmatpush1.bf16.msra.mxu0 0
    %1347 = vmatprep.subr.bf16.mxu0 0
    %1348 = vmatpush1.bf16.msra.mxu0 0
    %1349 = vmatprep.subr.bf16.mxu0 0
    %1350 = vmatpush1.bf16.msra.mxu0 0
    %1351 = vmatprep.subr.bf16.mxu0 0
    %1352 = vmatpush1.bf16.msra.mxu0 0
    %1353 = vmatprep.subr.bf16.mxu0 0
    %1354 = vmatpush1.bf16.msra.mxu0 0
    %1355 = vmatprep.subr.bf16.mxu0 0
    %1356 = vmatpush1.bf16.msra.mxu0 0
    %1357 = vmatprep.subr.bf16.mxu0 0
    %1358 = vmatpush1.bf16.msra.mxu0 0
    %1359 = vmatprep.subr.bf16.mxu0 0
    %1360 = vmatpush1.bf16.msra.mxu0 0
    %1361 = vmatprep.subr.bf16.mxu0 0
    %1362 = vmatpush1.bf16.msra.mxu0 0
    %1363 = vmatprep.mubr.bf16.mxu0 0
    %1364 = vmatmul.mubr.bf16.gmra.mrb[0].mxu0 %v1329
    %v1365 = vpop.f32.mrb[0].mxu0
    %v1366 = vadd.f32 %v1315, %v1365
    %v1367 = vpop.f32.mrb[0].mxu0
    %v1368 = vpop.f32.mrb[0].mxu0
    %v1369 = vpop.f32.mrb[0].mxu0
    %1370 = vdwg.mxu0
    %v1372 = vrot.slane %v1245, 2
    %v1374 = vsub.f32 %v1366, %v1372
    %v1375 = vrot.slane %v1245, 6
    %v1377 = vsub.f32 %v1366, %v1375
    %v1378 = vrot.slane %v1245, 4
    %v1380 = vsub.f32 %v1366, %v1378
    %v1381 = vmul.f32 %v1374, %v1374
    %vm1382 = vcmask 123904
    %v1383 = vsel %vm1382, %v1381, 0.0
    %1384 = vadd.xlane.f32.xlu0 %v1383
    %v1385 = vpop.xlane.xlu0 %1384
    %v1386 = vrot.slane %v1385, 4
    %v1387 = vadd.f32 %v1385, %v1386
    %v1388 = vrot.slane %v1387, 2
    %v1389 = vadd.f32 %v1387, %v1388
    %v1390 = vrot.slane %v1389, 1
    %v1391 = vadd.f32 %v1389, %v1390
    %s1392 = vtos %v1391
    %v1393 = vmul.f32 %v1377, %v1377
    %v1395 = vrot.slane %v1393, 2
    %v1397 = vsel %vm1382, %v1395, 0.0
    %1398 = vadd.xlane.f32.xlu0 %v1397
    %v1399 = vpop.xlane.xlu0 %1398
    %v1400 = vrot.slane %v1399, 4
    %v1401 = vadd.f32 %v1399, %v1400
    %v1402 = vrot.slane %v1401, 2
    %v1403 = vadd.f32 %v1401, %v1402
    %v1404 = vrot.slane %v1403, 1
    %v1405 = vadd.f32 %v1403, %v1404
    %s1406 = vtos %v1405
    %s1407 = smul.f32 %s1406, 2.0
    %s1408 = sadd.f32 %s1392, %s1407
    %v1409 = vmul.f32 %v1380, %v1380
    %v1410 = vsel %vm1382, %v1409, 0.0
    %1411 = vadd.xlane.f32.xlu0 %v1410
    %v1412 = vpop.xlane.xlu0 %1411
    %v1413 = vrot.slane %v1412, 4
    %v1414 = vadd.f32 %v1412, %v1413
    %v1415 = vrot.slane %v1414, 2
    %v1416 = vadd.f32 %v1414, %v1415
    %v1417 = vrot.slane %v1416, 1
    %v1418 = vadd.f32 %v1416, %v1417
    %s1419 = vtos %v1418
    %s1420 = sadd.f32 %s1408, %s1419
    %s1421 = smul.f32 %s1420, 0.03125
    %s1422 = scalar_lea.smem [#allocation2], 0
    %1423 = sst [smem:[%s1422]] %s1421
    // Predicated region
    $region14: #{efficient_byol_forward.1} parent=1 // pred_check
      _
    $region15: #{efficient_byol_forward.1} parent=1 // pred_check_branch
      %1425 = sbr.rel (0) target = $region17
    $region16: #{efficient_byol_forward.1} parent=1 // pred_region
      _
    $region17: #{efficient_byol_forward.1} parent=1 // pred_fallthru
      _
    // Predicated region
    $region18: #{efficient_byol_forward.1} parent=1 // pred_check
      _
    $region19: #{efficient_byol_forward.1} parent=1 // pred_check_branch
      %1427 = sbr.rel (0) target = $region21
    $region20: #{efficient_byol_forward.1} parent=1 // pred_region
      %s1429 = ssub.s32 16, 16
      %1430 = vsyncadd [#allocation3], %s1429
      %1433 = dma.smem_to_hbm [#allocation2], 16, %s4, [#allocation3]
    $region21: #{efficient_byol_forward.1} parent=1 // pred_fallthru
      _
    // Predicated region
    $region22: #{efficient_byol_forward.1} parent=1 // pred_check
      _
    $region23: #{efficient_byol_forward.1} parent=1 // pred_check_branch
      %1435 = sbr.rel (0) target = $region25
    $region24: #{efficient_byol_forward.1} parent=1 // pred_region
      _
    $region25: #{efficient_byol_forward.1} parent=1 // pred_fallthru
      _
    // Predicated region
    $region26: #{efficient_byol_forward.1} parent=1 // pred_check
      _
    $region27: #{efficient_byol_forward.1} parent=1 // pred_check_branch
      %1437 = sbr.rel (0) target = $region29
    $region28: #{efficient_byol_forward.1} parent=1 // pred_region
      %1438 = dma.done [#allocation3], 16
    $region29: #{efficient_byol_forward.1} parent=1 // pred_fallthru
      _
    %1439 = sfence
    %1440 = vsyncpa [#allocation3], 1

</llo_original>
